<compile_context>
chip_gen: v7x
topology: tpu7x:2x2x1
jax: 0.10.0
libtpu: 0.0.40
codegen_flags: <defaults>
</compile_context>

<pallas_src>
import jax
import jax.numpy as jnp
from jax import lax
from jax.experimental import pallas as pl
from jax.experimental.pallas import tpu as pltpu

EPS = 1e-5


# ------------------------------ fused kernel ---------------------------------

def _make_fused_kernel(M, W):
    # Flattened-index offsets of the 9 conv taps: source pixel m' = m + (dy-1)*W + (dx-1).
    offs = [(dy - 1) * W + (dx - 1) for dy in range(3) for dx in range(3)]

    def conv_bn_relu(x, tap_mask, w_ref, b_ref, g_ref, be_ref):
        # x: (Cin, M) f32; tap_mask: (9*Cin, M) f32 in {0,1}; w_ref: (Cout, 9*Cin).
        # Transposed im2col via XLU lane rolls + boundary masks (no pad buffers,
        # no misaligned slices, no lane-axis concat; sublane-aligned row blocks).
        taps = [x if off == 0 else pltpu.roll(x, (-off) % M, axis=1)
                for off in offs]
        patches = jnp.concatenate(taps, axis=0) * tap_mask            # (9*Cin, M)
        # One MXU matmul per layer; result is already the transposed (Cout, M).
        y = jnp.dot(w_ref[...], patches,
                    preferred_element_type=jnp.float32) + b_ref[...]  # (Cout, M)
        # Training-mode BatchNorm: biased batch stats reduced along the dense lane axis.
        mean = jnp.mean(y, axis=1, keepdims=True)                     # (Cout, 1)
        cent = y - mean
        var = jnp.mean(cent * cent, axis=1, keepdims=True)            # biased var
        scale = g_ref[...] * lax.rsqrt(var + EPS)                     # EUP rsqrt
        return jnp.maximum(cent * scale + be_ref[...], 0.0)           # (Cout, M)

    def kernel(x_ref, m1_ref, m2_ref, m3_ref,
               w1_ref, b1_ref, g1_ref, be1_ref,
               w2_ref, b2_ref, g2_ref, be2_ref,
               w3_ref, b3_ref, g3_ref, be3_ref,
               o_ref):
        z1 = conv_bn_relu(x_ref[...], m1_ref[...], w1_ref, b1_ref, g1_ref, be1_ref)
        z2 = conv_bn_relu(z1, m2_ref[...], w2_ref, b2_ref, g2_ref, be2_ref)
        o_ref[...] = conv_bn_relu(z2, m3_ref[...], w3_ref, b3_ref, g3_ref, be3_ref)

    return kernel


# ----------------------- wrapper-side (XLA) relayouts -------------------------

def _tap_mask(cin, N, H, W):
    # (9*cin, M) {0,1} mask: zero where the tap's source pixel is outside the image.
    M = N * H * W
    idx = jnp.arange(M)
    hh = (idx // W) % H
    ww = idx % W
    rows = []
    for dy in range(3):
        for dx in range(3):
            valid = ((hh + (dy - 1) >= 0) & (hh + (dy - 1) < H) &
                     (ww + (dx - 1) >= 0) & (ww + (dx - 1) < W))
            rows.append(jnp.broadcast_to(valid[None, :], (cin, M)))
    return jnp.concatenate(rows, axis=0).astype(jnp.float32)


def _flat_weight(w_hwio, cin_pad):
    # (3, 3, cin, cout) HWIO -> (cout, 9*cin_pad), matching the tap/row ordering.
    kh, kw, cin, cout = w_hwio.shape
    wp = jnp.pad(w_hwio, ((0, 0), (0, 0), (0, cin_pad - cin), (0, 0)))
    return jnp.transpose(wp, (3, 0, 1, 2)).reshape(cout, kh * kw * cin_pad).astype(jnp.float32)


def cnn_layer_3_forward(x_nchw, params):
    (w1, b1, g1, be1), (w2, b2, g2, be2), (w3, b3, g3, be3) = params
    N, C0, H, W = x_nchw.shape
    C1, C2, C3 = w1.shape[3], w2.shape[3], w3.shape[3]
    M = N * H * W

    # Pad layer-1 input channels up to a sublane-aligned count so every im2col
    # row block is a full 8-row tile (zero channels x zero weight columns).
    C0p = max(8, -(-C0 // 8) * 8)

    # NCHW -> (C0, M) with M on the lane axis; tiny one-off XLA transpose.
    x_cm = jnp.transpose(x_nchw, (1, 0, 2, 3)).reshape(C0, M).astype(jnp.float32)
    x_cm = jnp.pad(x_cm, ((0, C0p - C0), (0, 0)))

    col = lambda v: v.reshape(-1, 1).astype(jnp.float32)   # (C,) -> (C, 1)

    args = (
        x_cm,
        _tap_mask(C0p, N, H, W), _tap_mask(C1, N, H, W), _tap_mask(C2, N, H, W),
        _flat_weight(w1, C0p), col(b1), col(g1), col(be1),
        _flat_weight(w2, C1),  col(b2), col(g2), col(be2),
        _flat_weight(w3, C2),  col(b3), col(g3), col(be3),
    )

    vmem = pl.BlockSpec(memory_space=pltpu.MemorySpace.VMEM)   # whole array in VMEM
    out_cm = pl.pallas_call(
        _make_fused_kernel(M, W),
        out_shape=jax.ShapeDtypeStruct((C3, M), jnp.float32),
        in_specs=[vmem] * len(args),
        out_specs=vmem,
    )(*args)

    # (C3, N*H*W) -> (N, C3, H, W): free reshape + one tiny XLA transpose.
    return jnp.transpose(out_cm.reshape(C3, N, H, W), (1, 0, 2, 3))


# --------------------------- parameter construction --------------------------

def init_conv_params(key, cin, cout, k=3):
    # PyTorch Conv2d default init: U(-1/sqrt(fan_in), 1/sqrt(fan_in))
    fan_in = cin * k * k
    bound = 1.0 / jnp.sqrt(fan_in)
    kw, kb = jax.random.split(key)
    w = jax.random.uniform(kw, (k, k, cin, cout), jnp.float32, -bound, bound)  # HWIO
    b = jax.random.uniform(kb, (cout,), jnp.float32, -bound, bound)
    return w, b


def init_params(key, in_cn, mid_cn, out_cm):
    keys = jax.random.split(key, 3)
    dims = [(in_cn, mid_cn), (mid_cn, mid_cn), (mid_cn, out_cm)]
    params = []
    for k, (ci, co) in zip(keys, dims):
        w, b = init_conv_params(k, ci, co)
        gamma = jnp.ones((co,), jnp.float32)   # BatchNorm2d default weight
        beta = jnp.zeros((co,), jnp.float32)   # BatchNorm2d default bias
        params.append((w, b, gamma, beta))
    return params


# ------------------------------ pure-JAX reference ---------------------------

def reference_forward(x_nchw, params, eps=EPS):
    x = jnp.transpose(x_nchw, (0, 2, 3, 1)).astype(jnp.float32)
    for (w, b, gamma, beta) in params:
        y = lax.conv_general_dilated(
            x, w, window_strides=(1, 1), padding=((1, 1), (1, 1)),
            dimension_numbers=("NHWC", "HWIO", "NHWC"),
            precision=lax.Precision.HIGHEST) + b
        mean = jnp.mean(y, axis=(0, 1, 2))
        var = jnp.mean((y - mean) ** 2, axis=(0, 1, 2))   # biased, like PyTorch BN
        x = jnp.maximum((y - mean) / jnp.sqrt(var + eps) * gamma + beta, 0.0)
    return jnp.transpose(x, (0, 3, 1, 2))


# ----------------------------------- main ------------------------------------

if __name__ == "__main__":
    in_cn, mid_cn, out_cm = 4, 8, 8
    N, H, W = 2, 16, 16

    key = jax.random.PRNGKey(0)
    kx, kp = jax.random.split(key)
    x = jax.random.normal(kx, (N, in_cn, H, W), jnp.float32)   # NCHW like PyTorch
    params = init_params(kp, in_cn, mid_cn, out_cm)

    out = jax.block_until_ready(jax.jit(cnn_layer_3_forward)(x, params))
    assert out.shape == (N, out_cm, H, W), out.shape

    ref = reference_forward(x, params)
    max_err = float(jnp.max(jnp.abs(out - ref)))
    assert jnp.allclose(out, ref, atol=5e-3, rtol=5e-3), f"max abs err {max_err}"

    print("KERNEL_OK")
</pallas_src>

<mosaic_0001>
module attributes {stable_mosaic.version = 11 : i64} {
  func.func @kernel(%arg0: memref<8x512xf32, #tpu.memory_space<vmem>>, %arg1: memref<72x512xf32, #tpu.memory_space<vmem>>, %arg2: memref<72x512xf32, #tpu.memory_space<vmem>>, %arg3: memref<72x512xf32, #tpu.memory_space<vmem>>, %arg4: memref<8x72xf32, #tpu.memory_space<vmem>>, %arg5: memref<8x1xf32, #tpu.memory_space<vmem>>, %arg6: memref<8x1xf32, #tpu.memory_space<vmem>>, %arg7: memref<8x1xf32, #tpu.memory_space<vmem>>, %arg8: memref<8x72xf32, #tpu.memory_space<vmem>>, %arg9: memref<8x1xf32, #tpu.memory_space<vmem>>, %arg10: memref<8x1xf32, #tpu.memory_space<vmem>>, %arg11: memref<8x1xf32, #tpu.memory_space<vmem>>, %arg12: memref<8x72xf32, #tpu.memory_space<vmem>>, %arg13: memref<8x1xf32, #tpu.memory_space<vmem>>, %arg14: memref<8x1xf32, #tpu.memory_space<vmem>>, %arg15: memref<8x1xf32, #tpu.memory_space<vmem>>, %arg16: memref<8x512xf32, #tpu.memory_space<vmem>>) attributes {dimension_semantics = [], scalar_prefetch = 0 : i64, scratch_operands = 0 : i64, tpu.core_type = #tpu.core_type<tc>} {
    %c0 = arith.constant 0 : index
    %c0_0 = arith.constant 0 : index
    %0 = vector.load %arg0[%c0, %c0_0] : memref<8x512xf32, #tpu.memory_space<vmem>>, vector<8x512xf32>
    %c0_1 = arith.constant 0 : index
    %c0_2 = arith.constant 0 : index
    %1 = vector.load %arg1[%c0_1, %c0_2] : memref<72x512xf32, #tpu.memory_space<vmem>>, vector<72x512xf32>
    %c17_i32 = arith.constant 17 : i32
    %2 = tpu.dynamic_rotate %0 by %c17_i32 dim 1 : vector<8x512xf32>, i32 -> vector<8x512xf32>
    %c16_i32 = arith.constant 16 : i32
    %3 = tpu.dynamic_rotate %0 by %c16_i32 dim 1 : vector<8x512xf32>, i32 -> vector<8x512xf32>
    %c15_i32 = arith.constant 15 : i32
    %4 = tpu.dynamic_rotate %0 by %c15_i32 dim 1 : vector<8x512xf32>, i32 -> vector<8x512xf32>
    %c1_i32 = arith.constant 1 : i32
    %5 = tpu.dynamic_rotate %0 by %c1_i32 dim 1 : vector<8x512xf32>, i32 -> vector<8x512xf32>
    %c511_i32 = arith.constant 511 : i32
    %6 = tpu.dynamic_rotate %0 by %c511_i32 dim 1 : vector<8x512xf32>, i32 -> vector<8x512xf32>
    %c497_i32 = arith.constant 497 : i32
    %7 = tpu.dynamic_rotate %0 by %c497_i32 dim 1 : vector<8x512xf32>, i32 -> vector<8x512xf32>
    %c496_i32 = arith.constant 496 : i32
    %8 = tpu.dynamic_rotate %0 by %c496_i32 dim 1 : vector<8x512xf32>, i32 -> vector<8x512xf32>
    %c495_i32 = arith.constant 495 : i32
    %9 = tpu.dynamic_rotate %0 by %c495_i32 dim 1 : vector<8x512xf32>, i32 -> vector<8x512xf32>
    %10 = tpu.concatenate %2, %3, %4, %5, %0, %6, %7, %8, %9 in 0 : vector<8x512xf32>, vector<8x512xf32>, vector<8x512xf32>, vector<8x512xf32>, vector<8x512xf32>, vector<8x512xf32>, vector<8x512xf32>, vector<8x512xf32>, vector<8x512xf32> -> vector<72x512xf32>
    %11 = arith.mulf %10, %1 : vector<72x512xf32>
    %c0_3 = arith.constant 0 : index
    %c0_4 = arith.constant 0 : index
    %12 = vector.load %arg4[%c0_3, %c0_4] : memref<8x72xf32, #tpu.memory_space<vmem>>, vector<8x72xf32>
    %cst = arith.constant dense<0.000000e+00> : vector<8x512xf32>
    %13 = tpu.matmul %12, %11, %cst {dimension_numbers = #tpu.dot_dimension_numbers<[1], [0], [0], [1], [0, 0, 1, 1], [], []>} : vector<8x72xf32>, vector<72x512xf32>, vector<8x512xf32> -> vector<8x512xf32>
    %c0_5 = arith.constant 0 : index
    %c0_6 = arith.constant 0 : index
    %14 = vector.load %arg5[%c0_5, %c0_6] : memref<8x1xf32, #tpu.memory_space<vmem>>, vector<8x1xf32>
    %15 = vector.broadcast %14 : vector<8x1xf32> to vector<8x512xf32>
    %16 = arith.addf %13, %15 : vector<8x512xf32>
    %cst_7 = arith.constant dense<0.000000e+00> : vector<8xf32>
    %17 = vector.multi_reduction <add>, %16, %cst_7 [1] : vector<8x512xf32> to vector<8xf32>
    %18 = vector.shape_cast %17 : vector<8xf32> to vector<8x1xf32>
    %cst_8 = arith.constant 5.120000e+02 : f32
    %19 = vector.broadcast %cst_8 : f32 to vector<8x1xf32>
    %20 = arith.divf %18, %19 : vector<8x1xf32>
    %21 = vector.broadcast %20 : vector<8x1xf32> to vector<8x512xf32>
    %22 = arith.subf %16, %21 : vector<8x512xf32>
    %23 = arith.mulf %22, %22 : vector<8x512xf32>
    %cst_9 = arith.constant dense<0.000000e+00> : vector<8xf32>
    %24 = vector.multi_reduction <add>, %23, %cst_9 [1] : vector<8x512xf32> to vector<8xf32>
    %25 = vector.shape_cast %24 : vector<8xf32> to vector<8x1xf32>
    %cst_10 = arith.constant 5.120000e+02 : f32
    %26 = vector.broadcast %cst_10 : f32 to vector<8x1xf32>
    %27 = arith.divf %25, %26 : vector<8x1xf32>
    %c0_11 = arith.constant 0 : index
    %c0_12 = arith.constant 0 : index
    %28 = vector.load %arg6[%c0_11, %c0_12] : memref<8x1xf32, #tpu.memory_space<vmem>>, vector<8x1xf32>
    %cst_13 = arith.constant 9.99999974E-6 : f32
    %29 = vector.broadcast %cst_13 : f32 to vector<8x1xf32>
    %30 = arith.addf %27, %29 : vector<8x1xf32>
    %31 = math.rsqrt %30 : vector<8x1xf32>
    %32 = arith.mulf %28, %31 : vector<8x1xf32>
    %33 = vector.broadcast %32 : vector<8x1xf32> to vector<8x512xf32>
    %34 = arith.mulf %22, %33 : vector<8x512xf32>
    %c0_14 = arith.constant 0 : index
    %c0_15 = arith.constant 0 : index
    %35 = vector.load %arg7[%c0_14, %c0_15] : memref<8x1xf32, #tpu.memory_space<vmem>>, vector<8x1xf32>
    %36 = vector.broadcast %35 : vector<8x1xf32> to vector<8x512xf32>
    %37 = arith.addf %34, %36 : vector<8x512xf32>
    %cst_16 = arith.constant 0.000000e+00 : f32
    %38 = vector.broadcast %cst_16 : f32 to vector<8x512xf32>
    %39 = arith.maximumf %37, %38 : vector<8x512xf32>
    %c0_17 = arith.constant 0 : index
    %c0_18 = arith.constant 0 : index
    %40 = vector.load %arg2[%c0_17, %c0_18] : memref<72x512xf32, #tpu.memory_space<vmem>>, vector<72x512xf32>
    %c17_i32_19 = arith.constant 17 : i32
    %41 = tpu.dynamic_rotate %39 by %c17_i32_19 dim 1 : vector<8x512xf32>, i32 -> vector<8x512xf32>
    %c16_i32_20 = arith.constant 16 : i32
    %42 = tpu.dynamic_rotate %39 by %c16_i32_20 dim 1 : vector<8x512xf32>, i32 -> vector<8x512xf32>
    %c15_i32_21 = arith.constant 15 : i32
    %43 = tpu.dynamic_rotate %39 by %c15_i32_21 dim 1 : vector<8x512xf32>, i32 -> vector<8x512xf32>
    %c1_i32_22 = arith.constant 1 : i32
    %44 = tpu.dynamic_rotate %39 by %c1_i32_22 dim 1 : vector<8x512xf32>, i32 -> vector<8x512xf32>
    %c511_i32_23 = arith.constant 511 : i32
    %45 = tpu.dynamic_rotate %39 by %c511_i32_23 dim 1 : vector<8x512xf32>, i32 -> vector<8x512xf32>
    %c497_i32_24 = arith.constant 497 : i32
    %46 = tpu.dynamic_rotate %39 by %c497_i32_24 dim 1 : vector<8x512xf32>, i32 -> vector<8x512xf32>
    %c496_i32_25 = arith.constant 496 : i32
    %47 = tpu.dynamic_rotate %39 by %c496_i32_25 dim 1 : vector<8x512xf32>, i32 -> vector<8x512xf32>
    %c495_i32_26 = arith.constant 495 : i32
    %48 = tpu.dynamic_rotate %39 by %c495_i32_26 dim 1 : vector<8x512xf32>, i32 -> vector<8x512xf32>
    %49 = tpu.concatenate %41, %42, %43, %44, %39, %45, %46, %47, %48 in 0 : vector<8x512xf32>, vector<8x512xf32>, vector<8x512xf32>, vector<8x512xf32>, vector<8x512xf32>, vector<8x512xf32>, vector<8x512xf32>, vector<8x512xf32>, vector<8x512xf32> -> vector<72x512xf32>
    %50 = arith.mulf %49, %40 : vector<72x512xf32>
    %c0_27 = arith.constant 0 : index
    %c0_28 = arith.constant 0 : index
    %51 = vector.load %arg8[%c0_27, %c0_28] : memref<8x72xf32, #tpu.memory_space<vmem>>, vector<8x72xf32>
    %cst_29 = arith.constant dense<0.000000e+00> : vector<8x512xf32>
    %52 = tpu.matmul %51, %50, %cst_29 {dimension_numbers = #tpu.dot_dimension_numbers<[1], [0], [0], [1], [0, 0, 1, 1], [], []>} : vector<8x72xf32>, vector<72x512xf32>, vector<8x512xf32> -> vector<8x512xf32>
    %c0_30 = arith.constant 0 : index
    %c0_31 = arith.constant 0 : index
    %53 = vector.load %arg9[%c0_30, %c0_31] : memref<8x1xf32, #tpu.memory_space<vmem>>, vector<8x1xf32>
    %54 = vector.broadcast %53 : vector<8x1xf32> to vector<8x512xf32>
    %55 = arith.addf %52, %54 : vector<8x512xf32>
    %cst_32 = arith.constant dense<0.000000e+00> : vector<8xf32>
    %56 = vector.multi_reduction <add>, %55, %cst_32 [1] : vector<8x512xf32> to vector<8xf32>
    %57 = vector.shape_cast %56 : vector<8xf32> to vector<8x1xf32>
    %cst_33 = arith.constant 5.120000e+02 : f32
    %58 = vector.broadcast %cst_33 : f32 to vector<8x1xf32>
    %59 = arith.divf %57, %58 : vector<8x1xf32>
    %60 = vector.broadcast %59 : vector<8x1xf32> to vector<8x512xf32>
    %61 = arith.subf %55, %60 : vector<8x512xf32>
    %62 = arith.mulf %61, %61 : vector<8x512xf32>
    %cst_34 = arith.constant dense<0.000000e+00> : vector<8xf32>
    %63 = vector.multi_reduction <add>, %62, %cst_34 [1] : vector<8x512xf32> to vector<8xf32>
    %64 = vector.shape_cast %63 : vector<8xf32> to vector<8x1xf32>
    %cst_35 = arith.constant 5.120000e+02 : f32
    %65 = vector.broadcast %cst_35 : f32 to vector<8x1xf32>
    %66 = arith.divf %64, %65 : vector<8x1xf32>
    %c0_36 = arith.constant 0 : index
    %c0_37 = arith.constant 0 : index
    %67 = vector.load %arg10[%c0_36, %c0_37] : memref<8x1xf32, #tpu.memory_space<vmem>>, vector<8x1xf32>
    %cst_38 = arith.constant 9.99999974E-6 : f32
    %68 = vector.broadcast %cst_38 : f32 to vector<8x1xf32>
    %69 = arith.addf %66, %68 : vector<8x1xf32>
    %70 = math.rsqrt %69 : vector<8x1xf32>
    %71 = arith.mulf %67, %70 : vector<8x1xf32>
    %72 = vector.broadcast %71 : vector<8x1xf32> to vector<8x512xf32>
    %73 = arith.mulf %61, %72 : vector<8x512xf32>
    %c0_39 = arith.constant 0 : index
    %c0_40 = arith.constant 0 : index
    %74 = vector.load %arg11[%c0_39, %c0_40] : memref<8x1xf32, #tpu.memory_space<vmem>>, vector<8x1xf32>
    %75 = vector.broadcast %74 : vector<8x1xf32> to vector<8x512xf32>
    %76 = arith.addf %73, %75 : vector<8x512xf32>
    %cst_41 = arith.constant 0.000000e+00 : f32
    %77 = vector.broadcast %cst_41 : f32 to vector<8x512xf32>
    %78 = arith.maximumf %76, %77 : vector<8x512xf32>
    %c0_42 = arith.constant 0 : index
    %c0_43 = arith.constant 0 : index
    %79 = vector.load %arg3[%c0_42, %c0_43] : memref<72x512xf32, #tpu.memory_space<vmem>>, vector<72x512xf32>
    %c17_i32_44 = arith.constant 17 : i32
    %80 = tpu.dynamic_rotate %78 by %c17_i32_44 dim 1 : vector<8x512xf32>, i32 -> vector<8x512xf32>
    %c16_i32_45 = arith.constant 16 : i32
    %81 = tpu.dynamic_rotate %78 by %c16_i32_45 dim 1 : vector<8x512xf32>, i32 -> vector<8x512xf32>
    %c15_i32_46 = arith.constant 15 : i32
    %82 = tpu.dynamic_rotate %78 by %c15_i32_46 dim 1 : vector<8x512xf32>, i32 -> vector<8x512xf32>
    %c1_i32_47 = arith.constant 1 : i32
    %83 = tpu.dynamic_rotate %78 by %c1_i32_47 dim 1 : vector<8x512xf32>, i32 -> vector<8x512xf32>
    %c511_i32_48 = arith.constant 511 : i32
    %84 = tpu.dynamic_rotate %78 by %c511_i32_48 dim 1 : vector<8x512xf32>, i32 -> vector<8x512xf32>
    %c497_i32_49 = arith.constant 497 : i32
    %85 = tpu.dynamic_rotate %78 by %c497_i32_49 dim 1 : vector<8x512xf32>, i32 -> vector<8x512xf32>
    %c496_i32_50 = arith.constant 496 : i32
    %86 = tpu.dynamic_rotate %78 by %c496_i32_50 dim 1 : vector<8x512xf32>, i32 -> vector<8x512xf32>
    %c495_i32_51 = arith.constant 495 : i32
    %87 = tpu.dynamic_rotate %78 by %c495_i32_51 dim 1 : vector<8x512xf32>, i32 -> vector<8x512xf32>
    %88 = tpu.concatenate %80, %81, %82, %83, %78, %84, %85, %86, %87 in 0 : vector<8x512xf32>, vector<8x512xf32>, vector<8x512xf32>, vector<8x512xf32>, vector<8x512xf32>, vector<8x512xf32>, vector<8x512xf32>, vector<8x512xf32>, vector<8x512xf32> -> vector<72x512xf32>
    %89 = arith.mulf %88, %79 : vector<72x512xf32>
    %c0_52 = arith.constant 0 : index
    %c0_53 = arith.constant 0 : index
    %90 = vector.load %arg12[%c0_52, %c0_53] : memref<8x72xf32, #tpu.memory_space<vmem>>, vector<8x72xf32>
    %cst_54 = arith.constant dense<0.000000e+00> : vector<8x512xf32>
    %91 = tpu.matmul %90, %89, %cst_54 {dimension_numbers = #tpu.dot_dimension_numbers<[1], [0], [0], [1], [0, 0, 1, 1], [], []>} : vector<8x72xf32>, vector<72x512xf32>, vector<8x512xf32> -> vector<8x512xf32>
    %c0_55 = arith.constant 0 : index
    %c0_56 = arith.constant 0 : index
    %92 = vector.load %arg13[%c0_55, %c0_56] : memref<8x1xf32, #tpu.memory_space<vmem>>, vector<8x1xf32>
    %93 = vector.broadcast %92 : vector<8x1xf32> to vector<8x512xf32>
    %94 = arith.addf %91, %93 : vector<8x512xf32>
    %cst_57 = arith.constant dense<0.000000e+00> : vector<8xf32>
    %95 = vector.multi_reduction <add>, %94, %cst_57 [1] : vector<8x512xf32> to vector<8xf32>
    %96 = vector.shape_cast %95 : vector<8xf32> to vector<8x1xf32>
    %cst_58 = arith.constant 5.120000e+02 : f32
    %97 = vector.broadcast %cst_58 : f32 to vector<8x1xf32>
    %98 = arith.divf %96, %97 : vector<8x1xf32>
    %99 = vector.broadcast %98 : vector<8x1xf32> to vector<8x512xf32>
    %100 = arith.subf %94, %99 : vector<8x512xf32>
    %101 = arith.mulf %100, %100 : vector<8x512xf32>
    %cst_59 = arith.constant dense<0.000000e+00> : vector<8xf32>
    %102 = vector.multi_reduction <add>, %101, %cst_59 [1] : vector<8x512xf32> to vector<8xf32>
    %103 = vector.shape_cast %102 : vector<8xf32> to vector<8x1xf32>
    %cst_60 = arith.constant 5.120000e+02 : f32
    %104 = vector.broadcast %cst_60 : f32 to vector<8x1xf32>
    %105 = arith.divf %103, %104 : vector<8x1xf32>
    %c0_61 = arith.constant 0 : index
    %c0_62 = arith.constant 0 : index
    %106 = vector.load %arg14[%c0_61, %c0_62] : memref<8x1xf32, #tpu.memory_space<vmem>>, vector<8x1xf32>
    %cst_63 = arith.constant 9.99999974E-6 : f32
    %107 = vector.broadcast %cst_63 : f32 to vector<8x1xf32>
    %108 = arith.addf %105, %107 : vector<8x1xf32>
    %109 = math.rsqrt %108 : vector<8x1xf32>
    %110 = arith.mulf %106, %109 : vector<8x1xf32>
    %111 = vector.broadcast %110 : vector<8x1xf32> to vector<8x512xf32>
    %112 = arith.mulf %100, %111 : vector<8x512xf32>
    %c0_64 = arith.constant 0 : index
    %c0_65 = arith.constant 0 : index
    %113 = vector.load %arg15[%c0_64, %c0_65] : memref<8x1xf32, #tpu.memory_space<vmem>>, vector<8x1xf32>
    %114 = vector.broadcast %113 : vector<8x1xf32> to vector<8x512xf32>
    %115 = arith.addf %112, %114 : vector<8x512xf32>
    %cst_66 = arith.constant 0.000000e+00 : f32
    %116 = vector.broadcast %cst_66 : f32 to vector<8x512xf32>
    %117 = arith.maximumf %115, %116 : vector<8x512xf32>
    %c0_67 = arith.constant 0 : index
    %c0_68 = arith.constant 0 : index
    %118 = vector.load %arg16[%c0_67, %c0_68] : memref<8x512xf32, #tpu.memory_space<vmem>>, vector<8x512xf32>
    tpu.vector_store %arg16[%c0_67, %c0_68], %117 {strides = array<i32>} : memref<8x512xf32, #tpu.memory_space<vmem>>, vector<8x512xf32>,
    return
  }
}

</mosaic_0001>

<llo_original>
// kernel: cnn_layer_3_forward.1
$region0: #{cnn_layer_3_forward.1}
  #allocation0 [shape = 'u32[]', space=smem, size = 0x4, offset = 0x4, fixed_abs, tag = 'smem constant byte address 0x4 - core index']
  #allocation1 [shape = 'u32[144,128]{1,0:T(1,128)}', space=vmem, size = 0x12000, scoped, tag = 'internal scratch']
  %s0 = inlined_call_operand.vmem [shape: f32[8,512], index: 0, kind: input, shape index: {}]
  %s1 = inlined_call_operand.vmem [shape: f32[72,512], index: 1, kind: input, shape index: {}, may-alias: {1,2,3}]
  %s2 = inlined_call_operand.vmem [shape: f32[72,512], index: 2, kind: input, shape index: {}, may-alias: {1,2,3}]
  %s3 = inlined_call_operand.vmem [shape: f32[72,512], index: 3, kind: input, shape index: {}, may-alias: {1,2,3}]
  %s4 = inlined_call_operand.vmem [shape: f32[8,72], index: 4, kind: input, shape index: {}]
  %s5 = inlined_call_operand.vmem [shape: f32[8,1], index: 5, kind: input, shape index: {}]
  %s6 = inlined_call_operand.vmem [shape: f32[8,1], index: 6, kind: input, shape index: {}]
  %s7 = inlined_call_operand.vmem [shape: f32[8,1], index: 7, kind: input, shape index: {}]
  %s8 = inlined_call_operand.vmem [shape: f32[8,72], index: 8, kind: input, shape index: {}]
  %s9 = inlined_call_operand.vmem [shape: f32[8,1], index: 9, kind: input, shape index: {}]
  %s10 = inlined_call_operand.vmem [shape: f32[8,1], index: 10, kind: input, shape index: {}]
  %s11 = inlined_call_operand.vmem [shape: f32[8,1], index: 11, kind: input, shape index: {}]
  %s12 = inlined_call_operand.vmem [shape: f32[8,72], index: 12, kind: input, shape index: {}]
  %s13 = inlined_call_operand.vmem [shape: f32[8,1], index: 13, kind: input, shape index: {}]
  %s14 = inlined_call_operand.vmem [shape: f32[8,1], index: 14, kind: input, shape index: {}]
  %s15 = inlined_call_operand.vmem [shape: f32[8,1], index: 15, kind: input, shape index: {}]
  %s16 = inlined_call_operand.vmem [shape: f32[8,512], index: 16, kind: output, shape index: {}]
  %s17 = sld [smem:[#allocation0]]
  $region74: #{cnn_layer_3_forward.1} parent=0
    _
  %s19 = ssub.s32 1, %s17
  %s20 = scalar_select 0, %s19, %s17
  // Predicated region
  $region2: #{cnn_layer_3_forward.1} parent=0 // pred_check
    _
  $region3: #{cnn_layer_3_forward.1} parent=0 // pred_check_branch
    %22 = sbr.rel (0) target = $region5
  $region4: #{cnn_layer_3_forward.1} parent=0 // pred_region
    _
  $region5: #{cnn_layer_3_forward.1} parent=0 // pred_fallthru
    _
  // Predicated region
  $region6: #{cnn_layer_3_forward.1} parent=0 // pred_check
    _
  $region7: #{cnn_layer_3_forward.1} parent=0 // pred_check_branch
    %24 = sbr.rel (0) target = $region9
  $region8: #{cnn_layer_3_forward.1} parent=0 // pred_region
    _
  $region9: #{cnn_layer_3_forward.1} parent=0 // pred_fallthru
    _
  // Predicated region
  $region10: #{cnn_layer_3_forward.1} parent=0 // pred_check
    _
  $region11: #{cnn_layer_3_forward.1} parent=0 // pred_check_branch
    %26 = sbr.rel (0) target = $region13
  $region12: #{cnn_layer_3_forward.1} parent=0 // pred_region
    _
  $region13: #{cnn_layer_3_forward.1} parent=0 // pred_fallthru
    _
  // Predicated region
  $region14: #{cnn_layer_3_forward.1} parent=0 // pred_check
    _
  $region15: #{cnn_layer_3_forward.1} parent=0 // pred_check_branch
    %28 = sbr.rel (0) target = $region17
  $region16: #{cnn_layer_3_forward.1} parent=0 // pred_region
    _
  $region17: #{cnn_layer_3_forward.1} parent=0 // pred_fallthru
    _
  // Predicated region
  $region18: #{cnn_layer_3_forward.1} parent=0 // pred_check
    _
  $region19: #{cnn_layer_3_forward.1} parent=0 // pred_check_branch
    %30 = sbr.rel (0) target = $region21
  $region20: #{cnn_layer_3_forward.1} parent=0 // pred_region
    _
  $region21: #{cnn_layer_3_forward.1} parent=0 // pred_fallthru
    _
  // Predicated region
  $region22: #{cnn_layer_3_forward.1} parent=0 // pred_check
    _
  $region23: #{cnn_layer_3_forward.1} parent=0 // pred_check_branch
    %32 = sbr.rel (0) target = $region25
  $region24: #{cnn_layer_3_forward.1} parent=0 // pred_region
    _
  $region25: #{cnn_layer_3_forward.1} parent=0 // pred_fallthru
    _
  // Predicated region
  $region26: #{cnn_layer_3_forward.1} parent=0 // pred_check
    _
  $region27: #{cnn_layer_3_forward.1} parent=0 // pred_check_branch
    %34 = sbr.rel (0) target = $region29
  $region28: #{cnn_layer_3_forward.1} parent=0 // pred_region
    _
  $region29: #{cnn_layer_3_forward.1} parent=0 // pred_fallthru
    _
  // Predicated region
  $region30: #{cnn_layer_3_forward.1} parent=0 // pred_check
    _
  $region31: #{cnn_layer_3_forward.1} parent=0 // pred_check_branch
    %36 = sbr.rel (0) target = $region33
  $region32: #{cnn_layer_3_forward.1} parent=0 // pred_region
    _
  $region33: #{cnn_layer_3_forward.1} parent=0 // pred_fallthru
    _
  // Predicated region
  $region34: #{cnn_layer_3_forward.1} parent=0 // pred_check
    _
  $region35: #{cnn_layer_3_forward.1} parent=0 // pred_check_branch
    %38 = sbr.rel (0) target = $region37
  $region36: #{cnn_layer_3_forward.1} parent=0 // pred_region
    _
  $region37: #{cnn_layer_3_forward.1} parent=0 // pred_fallthru
    _
  // Predicated region
  $region38: #{cnn_layer_3_forward.1} parent=0 // pred_check
    _
  $region39: #{cnn_layer_3_forward.1} parent=0 // pred_check_branch
    %40 = sbr.rel (0) target = $region41
  $region40: #{cnn_layer_3_forward.1} parent=0 // pred_region
    _
  $region41: #{cnn_layer_3_forward.1} parent=0 // pred_fallthru
    _
  // Predicated region
  $region42: #{cnn_layer_3_forward.1} parent=0 // pred_check
    _
  $region43: #{cnn_layer_3_forward.1} parent=0 // pred_check_branch
    %42 = sbr.rel (0) target = $region45
  $region44: #{cnn_layer_3_forward.1} parent=0 // pred_region
    _
  $region45: #{cnn_layer_3_forward.1} parent=0 // pred_fallthru
    _
  // Predicated region
  $region46: #{cnn_layer_3_forward.1} parent=0 // pred_check
    _
  $region47: #{cnn_layer_3_forward.1} parent=0 // pred_check_branch
    %44 = sbr.rel (0) target = $region49
  $region48: #{cnn_layer_3_forward.1} parent=0 // pred_region
    _
  $region49: #{cnn_layer_3_forward.1} parent=0 // pred_fallthru
    _
  // Predicated region
  $region50: #{cnn_layer_3_forward.1} parent=0 // pred_check
    _
  $region51: #{cnn_layer_3_forward.1} parent=0 // pred_check_branch
    %46 = sbr.rel (0) target = $region53
  $region52: #{cnn_layer_3_forward.1} parent=0 // pred_region
    _
  $region53: #{cnn_layer_3_forward.1} parent=0 // pred_fallthru
    _
  // Predicated region
  $region54: #{cnn_layer_3_forward.1} parent=0 // pred_check
    _
  $region55: #{cnn_layer_3_forward.1} parent=0 // pred_check_branch
    %48 = sbr.rel (0) target = $region57
  $region56: #{cnn_layer_3_forward.1} parent=0 // pred_region
    _
  $region57: #{cnn_layer_3_forward.1} parent=0 // pred_fallthru
    _
  // Predicated region
  $region58: #{cnn_layer_3_forward.1} parent=0 // pred_check
    _
  $region59: #{cnn_layer_3_forward.1} parent=0 // pred_check_branch
    %50 = sbr.rel (0) target = $region61
  $region60: #{cnn_layer_3_forward.1} parent=0 // pred_region
    _
  $region61: #{cnn_layer_3_forward.1} parent=0 // pred_fallthru
    _
  // Predicated region
  $region62: #{cnn_layer_3_forward.1} parent=0 // pred_check
    _
  $region63: #{cnn_layer_3_forward.1} parent=0 // pred_check_branch
    %52 = sbr.rel (0) target = $region65
  $region64: #{cnn_layer_3_forward.1} parent=0 // pred_region
    _
  $region65: #{cnn_layer_3_forward.1} parent=0 // pred_fallthru
    _
  %v53 = vld [vmem:[%s0] sm:$0xff]
  %v54 = vld [vmem:[%s0 + $0x8] sm:$0xff]
  %v55 = vld [vmem:[%s0 + $0x10] sm:$0xff]
  %v56 = vld [vmem:[%s0 + $0x18] sm:$0xff]
  %v57 = vld [vmem:[%s1] sm:$0xff]
  %v58 = vld [vmem:[%s1 + $0x8] sm:$0xff]
  %v59 = vld [vmem:[%s1 + $0x10] sm:$0xff]
  %v60 = vld [vmem:[%s1 + $0x18] sm:$0xff]
  %v61 = vld [vmem:[%s1 + $0x20] sm:$0xff]
  %v62 = vld [vmem:[%s1 + $0x28] sm:$0xff]
  %v63 = vld [vmem:[%s1 + $0x30] sm:$0xff]
  %v64 = vld [vmem:[%s1 + $0x38] sm:$0xff]
  %v65 = vld [vmem:[%s1 + $0x40] sm:$0xff]
  %v66 = vld [vmem:[%s1 + $0x48] sm:$0xff]
  %v67 = vld [vmem:[%s1 + $0x50] sm:$0xff]
  %v68 = vld [vmem:[%s1 + $0x58] sm:$0xff]
  %v69 = vld [vmem:[%s1 + $0x60] sm:$0xff]
  %v70 = vld [vmem:[%s1 + $0x68] sm:$0xff]
  %v71 = vld [vmem:[%s1 + $0x70] sm:$0xff]
  %v72 = vld [vmem:[%s1 + $0x78] sm:$0xff]
  %v73 = vld [vmem:[%s1 + $0x80] sm:$0xff]
  %v74 = vld [vmem:[%s1 + $0x88] sm:$0xff]
  %v75 = vld [vmem:[%s1 + $0x90] sm:$0xff]
  %v76 = vld [vmem:[%s1 + $0x98] sm:$0xff]
  %v77 = vld [vmem:[%s1 + $0xa0] sm:$0xff]
  %v78 = vld [vmem:[%s1 + $0xa8] sm:$0xff]
  %v79 = vld [vmem:[%s1 + $0xb0] sm:$0xff]
  %v80 = vld [vmem:[%s1 + $0xb8] sm:$0xff]
  %v81 = vld [vmem:[%s1 + $0xc0] sm:$0xff]
  %v82 = vld [vmem:[%s1 + $0xc8] sm:$0xff]
  %v83 = vld [vmem:[%s1 + $0xd0] sm:$0xff]
  %v84 = vld [vmem:[%s1 + $0xd8] sm:$0xff]
  %v85 = vld [vmem:[%s1 + $0xe0] sm:$0xff]
  %v86 = vld [vmem:[%s1 + $0xe8] sm:$0xff]
  %v87 = vld [vmem:[%s1 + $0xf0] sm:$0xff]
  %v88 = vld [vmem:[%s1 + $0xf8] sm:$0xff]
  %v89 = vld [vmem:[%s1 + $0x100] sm:$0xff]
  %v90 = vld [vmem:[%s1 + $0x108] sm:$0xff]
  %v91 = vld [vmem:[%s1 + $0x110] sm:$0xff]
  %v92 = vld [vmem:[%s1 + $0x118] sm:$0xff]
  %93 = vrot.lane.b32.xlu0 %v53, 17
  %v94 = vpop.permute.xlu0 %93
  %95 = vrot.lane.b32.xlu0 %v54, 17
  %v96 = vpop.permute.xlu0 %95
  %97 = vrot.lane.b32.xlu0 %v55, 17
  %v98 = vpop.permute.xlu0 %97
  %99 = vrot.lane.b32.xlu0 %v56, 17
  %v100 = vpop.permute.xlu0 %99
  %v101 = vlaneseq
  %v102 = vand.u32 %v101, 127
  %vm103 = vcmp.lt.s32.totalorder %v102, 17
  %v104 = vsel %vm103, %v98, %v100
  %v105 = vsel %vm103, %v96, %v98
  %v106 = vsel %vm103, %v94, %v96
  %v107 = vsel %vm103, %v100, %v94
  %108 = vrot.lane.b32.xlu0 %v53, 16
  %v109 = vpop.permute.xlu0 %108
  %110 = vrot.lane.b32.xlu0 %v54, 16
  %v111 = vpop.permute.xlu0 %110
  %112 = vrot.lane.b32.xlu0 %v55, 16
  %v113 = vpop.permute.xlu0 %112
  %114 = vrot.lane.b32.xlu0 %v56, 16
  %v115 = vpop.permute.xlu0 %114
  %vm116 = vcmp.lt.s32.totalorder %v102, 16
  %v117 = vsel %vm116, %v113, %v115
  %v118 = vsel %vm116, %v111, %v113
  %v119 = vsel %vm116, %v109, %v111
  %v120 = vsel %vm116, %v115, %v109
  %121 = vrot.lane.b32.xlu0 %v53, 15
  %v122 = vpop.permute.xlu0 %121
  %123 = vrot.lane.b32.xlu0 %v54, 15
  %v124 = vpop.permute.xlu0 %123
  %125 = vrot.lane.b32.xlu0 %v55, 15
  %v126 = vpop.permute.xlu0 %125
  %127 = vrot.lane.b32.xlu0 %v56, 15
  %v128 = vpop.permute.xlu0 %127
  %vm129 = vcmp.lt.s32.totalorder %v102, 15
  %v130 = vsel %vm129, %v126, %v128
  %v131 = vsel %vm129, %v124, %v126
  %v132 = vsel %vm129, %v122, %v124
  %v133 = vsel %vm129, %v128, %v122
  %134 = vrot.lane.b32.xlu0 %v53, 1
  %v135 = vpop.permute.xlu0 %134
  %136 = vrot.lane.b32.xlu0 %v54, 1
  %v137 = vpop.permute.xlu0 %136
  %138 = vrot.lane.b32.xlu0 %v55, 1
  %v139 = vpop.permute.xlu0 %138
  %140 = vrot.lane.b32.xlu0 %v56, 1
  %v141 = vpop.permute.xlu0 %140
  %vm142 = vcmp.lt.s32.totalorder %v102, 1
  %v143 = vsel %vm142, %v139, %v141
  %v144 = vsel %vm142, %v137, %v139
  %v145 = vsel %vm142, %v135, %v137
  %v146 = vsel %vm142, %v141, %v135
  %147 = vrot.lane.b32.xlu0 %v53, 127
  %v148 = vpop.permute.xlu0 %147
  %149 = vrot.lane.b32.xlu0 %v54, 127
  %v150 = vpop.permute.xlu0 %149
  %151 = vrot.lane.b32.xlu0 %v55, 127
  %v152 = vpop.permute.xlu0 %151
  %153 = vrot.lane.b32.xlu0 %v56, 127
  %v154 = vpop.permute.xlu0 %153
  %vm155 = vcmp.lt.s32.totalorder %v102, 127
  %v156 = vsel %vm155, %v152, %v154
  %v157 = vsel %vm155, %v150, %v152
  %v158 = vsel %vm155, %v148, %v150
  %v159 = vsel %vm155, %v154, %v148
  %160 = vrot.lane.b32.xlu0 %v53, 113
  %v161 = vpop.permute.xlu0 %160
  %162 = vrot.lane.b32.xlu0 %v54, 113
  %v163 = vpop.permute.xlu0 %162
  %164 = vrot.lane.b32.xlu0 %v55, 113
  %v165 = vpop.permute.xlu0 %164
  %166 = vrot.lane.b32.xlu0 %v56, 113
  %v167 = vpop.permute.xlu0 %166
  %vm168 = vcmp.lt.s32.totalorder %v102, 113
  %v169 = vsel %vm168, %v165, %v167
  %v170 = vsel %vm168, %v163, %v165
  %v171 = vsel %vm168, %v161, %v163
  %v172 = vsel %vm168, %v167, %v161
  %173 = vrot.lane.b32.xlu0 %v53, 112
  %v174 = vpop.permute.xlu0 %173
  %175 = vrot.lane.b32.xlu0 %v54, 112
  %v176 = vpop.permute.xlu0 %175
  %177 = vrot.lane.b32.xlu0 %v55, 112
  %v178 = vpop.permute.xlu0 %177
  %179 = vrot.lane.b32.xlu0 %v56, 112
  %v180 = vpop.permute.xlu0 %179
  %vm181 = vcmp.lt.s32.totalorder %v102, 112
  %v182 = vsel %vm181, %v178, %v180
  %v183 = vsel %vm181, %v176, %v178
  %v184 = vsel %vm181, %v174, %v176
  %v185 = vsel %vm181, %v180, %v174
  %186 = vrot.lane.b32.xlu0 %v53, 111
  %v187 = vpop.permute.xlu0 %186
  %188 = vrot.lane.b32.xlu0 %v54, 111
  %v189 = vpop.permute.xlu0 %188
  %190 = vrot.lane.b32.xlu0 %v55, 111
  %v191 = vpop.permute.xlu0 %190
  %192 = vrot.lane.b32.xlu0 %v56, 111
  %v193 = vpop.permute.xlu0 %192
  %vm194 = vcmp.lt.s32.totalorder %v102, 111
  %v195 = vsel %vm194, %v191, %v193
  %v196 = vsel %vm194, %v189, %v191
  %v197 = vsel %vm194, %v187, %v189
  %v198 = vsel %vm194, %v193, %v187
  %v199 = vmul.f32 %v107, %v57
  %v200 = vmul.f32 %v106, %v58
  %v201 = vmul.f32 %v105, %v59
  %v202 = vmul.f32 %v104, %v60
  %v203 = vmul.f32 %v120, %v61
  %v204 = vmul.f32 %v119, %v62
  %v205 = vmul.f32 %v118, %v63
  %v206 = vmul.f32 %v117, %v64
  %v207 = vmul.f32 %v133, %v65
  %v208 = vmul.f32 %v132, %v66
  %v209 = vmul.f32 %v131, %v67
  %v210 = vmul.f32 %v130, %v68
  %v211 = vmul.f32 %v146, %v69
  %v212 = vmul.f32 %v145, %v70
  %v213 = vmul.f32 %v144, %v71
  %v214 = vmul.f32 %v143, %v72
  %v215 = vmul.f32 %v53, %v73
  %v216 = vmul.f32 %v54, %v74
  %v217 = vmul.f32 %v55, %v75
  %v218 = vmul.f32 %v56, %v76
  %v219 = vmul.f32 %v158, %v77
  %v220 = vmul.f32 %v157, %v78
  %v221 = vmul.f32 %v156, %v79
  %v222 = vmul.f32 %v159, %v80
  %v223 = vmul.f32 %v171, %v81
  %v224 = vmul.f32 %v170, %v82
  %v225 = vmul.f32 %v169, %v83
  %v226 = vmul.f32 %v172, %v84
  %v227 = vmul.f32 %v184, %v85
  %v228 = vmul.f32 %v183, %v86
  %v229 = vmul.f32 %v182, %v87
  %v230 = vmul.f32 %v185, %v88
  %v231 = vmul.f32 %v197, %v89
  %v232 = vmul.f32 %v196, %v90
  %v233 = vmul.f32 %v195, %v91
  %v234 = vmul.f32 %v198, %v92
  %v235 = vld [vmem:[%s4] sm:$0xff]
  %v236 = vld [vmem:[%s5] sm:$0xff]
  %238 = vset.pattern.permute.xlu0 0
  %239 = vperm.xlu0 %238, %v236
  %v240 = vpop.permute.xlu0 %239
  %vm242 = vcmask 588800
  %v244 = vsel %vm242, %v235, 0
  %246 = vmatprep.subr.mxu0 %v200
  %247 = vmatpush1.msra.mxu0 %v199
  %248 = vmatprep.subr.mxu0 %v204
  %249 = vmatpush1.msra.mxu0 %v203
  %250 = vmatprep.subr.mxu0 %v208
  %251 = vmatpush1.msra.mxu0 %v207
  %252 = vmatprep.subr.mxu0 %v212
  %253 = vmatpush1.msra.mxu0 %v211
  %254 = vmatprep.subr.mxu0 %v216
  %255 = vmatpush1.msra.mxu0 %v215
  %256 = vmatprep.subr.mxu0 %v220
  %257 = vmatpush1.msra.mxu0 %v219
  %258 = vmatprep.subr.mxu0 %v224
  %259 = vmatpush1.msra.mxu0 %v223
  %260 = vmatprep.subr.mxu0 %v228
  %261 = vmatpush1.msra.mxu0 %v227
  %262 = vmatprep.subr.mxu0 %v232
  %263 = vmatpush1.msra.mxu0 %v231
  %264 = vmatprep.subr.mxu0 0.0
  %265 = vmatpush1.msra.mxu0 0.0
  %266 = vmatprep.subr.mxu0 0.0
  %267 = vmatpush1.msra.mxu0 0.0
  %268 = vmatprep.subr.mxu0 0.0
  %269 = vmatpush1.msra.mxu0 0.0
  %270 = vmatprep.subr.mxu0 0.0
  %271 = vmatpush1.msra.mxu0 0.0
  %272 = vmatprep.subr.mxu0 0.0
  %273 = vmatpush1.msra.mxu0 0.0
  %274 = vmatprep.subr.mxu0 0.0
  %275 = vmatpush1.msra.mxu0 0.0
  %276 = vmatprep.subr.mxu0 0.0
  %277 = vmatpush1.msra.mxu0 0.0
  %278 = vmatprep.subr.mxu0 0.0
  %279 = vmatpush1.msra.mxu0 0.0
  %280 = vmatprep.subr.mxu0 0.0
  %281 = vmatpush1.msra.mxu0 0.0
  %282 = vmatprep.subr.mxu0 0.0
  %283 = vmatpush1.msra.mxu0 0.0
  %284 = vmatprep.subr.mxu0 0.0
  %285 = vmatpush1.msra.mxu0 0.0
  %286 = vmatprep.subr.mxu0 0.0
  %287 = vmatpush1.msra.mxu0 0.0
  %288 = vmatprep.subr.mxu0 0.0
  %289 = vmatpush1.msra.mxu0 0.0
  %290 = vmatprep.subr.mxu0 0.0
  %291 = vmatpush1.msra.mxu0 0.0
  %292 = vmatprep.subr.mxu0 0.0
  %293 = vmatpush1.msra.mxu0 0.0
  %294 = vmatprep.subr.mxu0 0.0
  %295 = vmatpush1.msra.mxu0 0.0
  %296 = vmatprep.subr.mxu0 0.0
  %297 = vmatpush1.msra.mxu0 0.0
  %298 = vmatprep.subr.mxu0 0.0
  %299 = vmatpush1.msra.mxu0 0.0
  %300 = vmatprep.subr.mxu0 0.0
  %301 = vmatpush1.msra.mxu0 0.0
  %302 = vmatprep.subr.mxu0 0.0
  %303 = vmatpush1.msra.mxu0 0.0
  %304 = vmatprep.subr.mxu0 0.0
  %305 = vmatpush1.msra.mxu0 0.0
  %306 = vmatprep.subr.mxu0 0.0
  %307 = vmatpush1.msra.mxu0 0.0
  %308 = vmatprep.subr.mxu0 0.0
  %309 = vmatpush1.msra.mxu0 0.0
  %310 = vmatprep.mubr.f32.mxu0 0.0
  %311 = vmatmul.mubr.f32.gmra.mrb[0].mxu0 %v244
  %v312 = vpop.f32.mrb[0].mxu0
  %v313 = vadd.f32 %v240, %v312
  %v314 = vpop.f32.mrb[0].mxu0
  %v315 = vadd.f32 %v240, %v314
  %316 = vdwg.mxu0
  %317 = vmatprep.subr.mxu0 %v202
  %318 = vmatpush1.msra.mxu0 %v201
  %319 = vmatprep.subr.mxu0 %v206
  %320 = vmatpush1.msra.mxu0 %v205
  %321 = vmatprep.subr.mxu0 %v210
  %322 = vmatpush1.msra.mxu0 %v209
  %323 = vmatprep.subr.mxu0 %v214
  %324 = vmatpush1.msra.mxu0 %v213
  %325 = vmatprep.subr.mxu0 %v218
  %326 = vmatpush1.msra.mxu0 %v217
  %327 = vmatprep.subr.mxu0 %v222
  %328 = vmatpush1.msra.mxu0 %v221
  %329 = vmatprep.subr.mxu0 %v226
  %330 = vmatpush1.msra.mxu0 %v225
  %331 = vmatprep.subr.mxu0 %v230
  %332 = vmatpush1.msra.mxu0 %v229
  %333 = vmatprep.subr.mxu0 %v234
  %334 = vmatpush1.msra.mxu0 %v233
  %335 = vmatprep.subr.mxu0 0.0
  %336 = vmatpush1.msra.mxu0 0.0
  %337 = vmatprep.subr.mxu0 0.0
  %338 = vmatpush1.msra.mxu0 0.0
  %339 = vmatprep.subr.mxu0 0.0
  %340 = vmatpush1.msra.mxu0 0.0
  %341 = vmatprep.subr.mxu0 0.0
  %342 = vmatpush1.msra.mxu0 0.0
  %343 = vmatprep.subr.mxu0 0.0
  %344 = vmatpush1.msra.mxu0 0.0
  %345 = vmatprep.subr.mxu0 0.0
  %346 = vmatpush1.msra.mxu0 0.0
  %347 = vmatprep.subr.mxu0 0.0
  %348 = vmatpush1.msra.mxu0 0.0
  %349 = vmatprep.subr.mxu0 0.0
  %350 = vmatpush1.msra.mxu0 0.0
  %351 = vmatprep.subr.mxu0 0.0
  %352 = vmatpush1.msra.mxu0 0.0
  %353 = vmatprep.subr.mxu0 0.0
  %354 = vmatpush1.msra.mxu0 0.0
  %355 = vmatprep.subr.mxu0 0.0
  %356 = vmatpush1.msra.mxu0 0.0
  %357 = vmatprep.subr.mxu0 0.0
  %358 = vmatpush1.msra.mxu0 0.0
  %359 = vmatprep.subr.mxu0 0.0
  %360 = vmatpush1.msra.mxu0 0.0
  %361 = vmatprep.subr.mxu0 0.0
  %362 = vmatpush1.msra.mxu0 0.0
  %363 = vmatprep.subr.mxu0 0.0
  %364 = vmatpush1.msra.mxu0 0.0
  %365 = vmatprep.subr.mxu0 0.0
  %366 = vmatpush1.msra.mxu0 0.0
  %367 = vmatprep.subr.mxu0 0.0
  %368 = vmatpush1.msra.mxu0 0.0
  %369 = vmatprep.subr.mxu0 0.0
  %370 = vmatpush1.msra.mxu0 0.0
  %371 = vmatprep.subr.mxu0 0.0
  %372 = vmatpush1.msra.mxu0 0.0
  %373 = vmatprep.subr.mxu0 0.0
  %374 = vmatpush1.msra.mxu0 0.0
  %375 = vmatprep.subr.mxu0 0.0
  %376 = vmatpush1.msra.mxu0 0.0
  %377 = vmatprep.subr.mxu0 0.0
  %378 = vmatpush1.msra.mxu0 0.0
  %379 = vmatprep.subr.mxu0 0.0
  %380 = vmatpush1.msra.mxu0 0.0
  %381 = vmatprep.mubr.f32.mxu0 0.0
  %382 = vmatmul.mubr.f32.gmra.mrb[0].mxu0 %v244
  %v383 = vpop.f32.mrb[0].mxu0
  %v384 = vadd.f32 %v240, %v383
  %v385 = vpop.f32.mrb[0].mxu0
  %v386 = vadd.f32 %v240, %v385
  %387 = vdwg.mxu0
  %v388 = vadd.f32 %v313, %v315
  %v389 = vadd.f32 %v388, %v384
  %v390 = vadd.f32 %v389, %v386
  %391 = vadd.xlane.f32.xlu0 %v390
  %v392 = vpop.xlane.xlu0 %391
  %v393 = vrcp.pop 512.0
  %v394 = vmul.f32 %v392, %v393
  %v395 = vsub.f32 %v313, %v394
  %v396 = vsub.f32 %v315, %v394
  %v397 = vsub.f32 %v384, %v394
  %v398 = vsub.f32 %v386, %v394
  %v399 = vmul.f32 %v395, %v395
  %v400 = vmul.f32 %v396, %v396
  %v401 = vmul.f32 %v397, %v397
  %v402 = vmul.f32 %v398, %v398
  %v403 = vadd.f32 %v399, %v400
  %v404 = vadd.f32 %v403, %v401
  %v405 = vadd.f32 %v404, %v402
  %406 = vadd.xlane.f32.xlu0 %v405
  %v407 = vpop.xlane.xlu0 %406
  %v408 = vmul.f32 %v407, %v393
  %v409 = vld [vmem:[%s6] sm:$0xff]
  %v410 = vadd.f32 %v408, 1e-05
  %v411 = vrsqrt.pop %v410
  %v412 = vmul.f32 %v409, %v411
  %414 = vset.pattern.permute.xlu0 0
  %415 = vperm.xlu0 %414, %v412
  %v416 = vpop.permute.xlu0 %415
  %v418 = vmul.f32 %v395, %v416
  %v419 = vmul.f32 %v396, %v416
  %v420 = vmul.f32 %v397, %v416
  %v421 = vmul.f32 %v398, %v416
  %v422 = vld [vmem:[%s7] sm:$0xff]
  %424 = vset.pattern.permute.xlu0 0
  %425 = vperm.xlu0 %424, %v422
  %v426 = vpop.permute.xlu0 %425
  %v428 = vadd.f32 %v418, %v426
  %v429 = vadd.f32 %v419, %v426
  %v430 = vadd.f32 %v420, %v426
  %v431 = vadd.f32 %v421, %v426
  %v432 = vmax.f32 %v428, 0.0
  %v433 = vmax.f32 %v429, 0.0
  %v434 = vmax.f32 %v430, 0.0
  %v435 = vmax.f32 %v431, 0.0
  %v436 = vld [vmem:[%s2] sm:$0xff]
  %v437 = vld [vmem:[%s2 + $0x8] sm:$0xff]
  %v438 = vld [vmem:[%s2 + $0x10] sm:$0xff]
  %v439 = vld [vmem:[%s2 + $0x18] sm:$0xff]
  %v440 = vld [vmem:[%s2 + $0x20] sm:$0xff]
  %v441 = vld [vmem:[%s2 + $0x28] sm:$0xff]
  %v442 = vld [vmem:[%s2 + $0x30] sm:$0xff]
  %v443 = vld [vmem:[%s2 + $0x38] sm:$0xff]
  %v444 = vld [vmem:[%s2 + $0x40] sm:$0xff]
  %v445 = vld [vmem:[%s2 + $0x48] sm:$0xff]
  %v446 = vld [vmem:[%s2 + $0x50] sm:$0xff]
  %v447 = vld [vmem:[%s2 + $0x58] sm:$0xff]
  %v448 = vld [vmem:[%s2 + $0x60] sm:$0xff]
  %v449 = vld [vmem:[%s2 + $0x68] sm:$0xff]
  %v450 = vld [vmem:[%s2 + $0x70] sm:$0xff]
  %v451 = vld [vmem:[%s2 + $0x78] sm:$0xff]
  %v452 = vld [vmem:[%s2 + $0x80] sm:$0xff]
  %v453 = vld [vmem:[%s2 + $0x88] sm:$0xff]
  %v454 = vld [vmem:[%s2 + $0x90] sm:$0xff]
  %v455 = vld [vmem:[%s2 + $0x98] sm:$0xff]
  %v456 = vld [vmem:[%s2 + $0xa0] sm:$0xff]
  %v457 = vld [vmem:[%s2 + $0xa8] sm:$0xff]
  %v458 = vld [vmem:[%s2 + $0xb0] sm:$0xff]
  %v459 = vld [vmem:[%s2 + $0xb8] sm:$0xff]
  %v460 = vld [vmem:[%s2 + $0xc0] sm:$0xff]
  %v461 = vld [vmem:[%s2 + $0xc8] sm:$0xff]
  %v462 = vld [vmem:[%s2 + $0xd0] sm:$0xff]
  %v463 = vld [vmem:[%s2 + $0xd8] sm:$0xff]
  %v464 = vld [vmem:[%s2 + $0xe0] sm:$0xff]
  %v465 = vld [vmem:[%s2 + $0xe8] sm:$0xff]
  %v466 = vld [vmem:[%s2 + $0xf0] sm:$0xff]
  %v467 = vld [vmem:[%s2 + $0xf8] sm:$0xff]
  %v468 = vld [vmem:[%s2 + $0x100] sm:$0xff]
  %v469 = vld [vmem:[%s2 + $0x108] sm:$0xff]
  %v470 = vld [vmem:[%s2 + $0x110] sm:$0xff]
  %v471 = vld [vmem:[%s2 + $0x118] sm:$0xff]
  %472 = vrot.lane.b32.xlu0 %v432, 17
  %v473 = vpop.permute.xlu0 %472
  %474 = vrot.lane.b32.xlu0 %v433, 17
  %v475 = vpop.permute.xlu0 %474
  %476 = vrot.lane.b32.xlu0 %v434, 17
  %v477 = vpop.permute.xlu0 %476
  %478 = vrot.lane.b32.xlu0 %v435, 17
  %v479 = vpop.permute.xlu0 %478
  %v480 = vsel %vm103, %v477, %v479
  %v481 = vsel %vm103, %v475, %v477
  %v482 = vsel %vm103, %v473, %v475
  %v483 = vsel %vm103, %v479, %v473
  %484 = vrot.lane.b32.xlu0 %v432, 16
  %v485 = vpop.permute.xlu0 %484
  %486 = vrot.lane.b32.xlu0 %v433, 16
  %v487 = vpop.permute.xlu0 %486
  %488 = vrot.lane.b32.xlu0 %v434, 16
  %v489 = vpop.permute.xlu0 %488
  %490 = vrot.lane.b32.xlu0 %v435, 16
  %v491 = vpop.permute.xlu0 %490
  %v492 = vsel %vm116, %v489, %v491
  %v493 = vsel %vm116, %v487, %v489
  %v494 = vsel %vm116, %v485, %v487
  %v495 = vsel %vm116, %v491, %v485
  %496 = vrot.lane.b32.xlu0 %v432, 15
  %v497 = vpop.permute.xlu0 %496
  %498 = vrot.lane.b32.xlu0 %v433, 15
  %v499 = vpop.permute.xlu0 %498
  %500 = vrot.lane.b32.xlu0 %v434, 15
  %v501 = vpop.permute.xlu0 %500
  %502 = vrot.lane.b32.xlu0 %v435, 15
  %v503 = vpop.permute.xlu0 %502
  %v504 = vsel %vm129, %v501, %v503
  %v505 = vsel %vm129, %v499, %v501
  %v506 = vsel %vm129, %v497, %v499
  %v507 = vsel %vm129, %v503, %v497
  %508 = vrot.lane.b32.xlu0 %v432, 1
  %v509 = vpop.permute.xlu0 %508
  %510 = vrot.lane.b32.xlu0 %v433, 1
  %v511 = vpop.permute.xlu0 %510
  %512 = vrot.lane.b32.xlu0 %v434, 1
  %v513 = vpop.permute.xlu0 %512
  %514 = vrot.lane.b32.xlu0 %v435, 1
  %v515 = vpop.permute.xlu0 %514
  %v516 = vsel %vm142, %v513, %v515
  %v517 = vsel %vm142, %v511, %v513
  %v518 = vsel %vm142, %v509, %v511
  %v519 = vsel %vm142, %v515, %v509
  %520 = vrot.lane.b32.xlu0 %v432, 127
  %v521 = vpop.permute.xlu0 %520
  %522 = vrot.lane.b32.xlu0 %v433, 127
  %v523 = vpop.permute.xlu0 %522
  %524 = vrot.lane.b32.xlu0 %v434, 127
  %v525 = vpop.permute.xlu0 %524
  %526 = vrot.lane.b32.xlu0 %v435, 127
  %v527 = vpop.permute.xlu0 %526
  %v528 = vsel %vm155, %v525, %v527
  %v529 = vsel %vm155, %v523, %v525
  %v530 = vsel %vm155, %v521, %v523
  %v531 = vsel %vm155, %v527, %v521
  %532 = vrot.lane.b32.xlu0 %v432, 113
  %v533 = vpop.permute.xlu0 %532
  %534 = vrot.lane.b32.xlu0 %v433, 113
  %v535 = vpop.permute.xlu0 %534
  %536 = vrot.lane.b32.xlu0 %v434, 113
  %v537 = vpop.permute.xlu0 %536
  %538 = vrot.lane.b32.xlu0 %v435, 113
  %v539 = vpop.permute.xlu0 %538
  %v540 = vsel %vm168, %v537, %v539
  %v541 = vsel %vm168, %v535, %v537
  %v542 = vsel %vm168, %v533, %v535
  %v543 = vsel %vm168, %v539, %v533
  %544 = vrot.lane.b32.xlu0 %v432, 112
  %v545 = vpop.permute.xlu0 %544
  %546 = vrot.lane.b32.xlu0 %v433, 112
  %v547 = vpop.permute.xlu0 %546
  %548 = vrot.lane.b32.xlu0 %v434, 112
  %v549 = vpop.permute.xlu0 %548
  %550 = vrot.lane.b32.xlu0 %v435, 112
  %v551 = vpop.permute.xlu0 %550
  %v552 = vsel %vm181, %v549, %v551
  %v553 = vsel %vm181, %v547, %v549
  %v554 = vsel %vm181, %v545, %v547
  %v555 = vsel %vm181, %v551, %v545
  %556 = vrot.lane.b32.xlu0 %v432, 111
  %v557 = vpop.permute.xlu0 %556
  %558 = vrot.lane.b32.xlu0 %v433, 111
  %v559 = vpop.permute.xlu0 %558
  %560 = vrot.lane.b32.xlu0 %v434, 111
  %v561 = vpop.permute.xlu0 %560
  %562 = vrot.lane.b32.xlu0 %v435, 111
  %v563 = vpop.permute.xlu0 %562
  %v564 = vsel %vm194, %v561, %v563
  %v565 = vsel %vm194, %v559, %v561
  %v566 = vsel %vm194, %v557, %v559
  %v567 = vsel %vm194, %v563, %v557
  %v568 = vmul.f32 %v483, %v436
  %v569 = vmul.f32 %v482, %v437
  %v570 = vmul.f32 %v481, %v438
  %v571 = vmul.f32 %v480, %v439
  %v572 = vmul.f32 %v495, %v440
  %v573 = vmul.f32 %v494, %v441
  %v574 = vmul.f32 %v493, %v442
  %v575 = vmul.f32 %v492, %v443
  %v576 = vmul.f32 %v507, %v444
  %v577 = vmul.f32 %v506, %v445
  %v578 = vmul.f32 %v505, %v446
  %v579 = vmul.f32 %v504, %v447
  %v580 = vmul.f32 %v519, %v448
  %v581 = vmul.f32 %v518, %v449
  %v582 = vmul.f32 %v517, %v450
  %v583 = vmul.f32 %v516, %v451
  %v584 = vmul.f32 %v432, %v452
  %v585 = vmul.f32 %v433, %v453
  %v586 = vmul.f32 %v434, %v454
  %v587 = vmul.f32 %v435, %v455
  %v588 = vmul.f32 %v530, %v456
  %v589 = vmul.f32 %v529, %v457
  %v590 = vmul.f32 %v528, %v458
  %v591 = vmul.f32 %v531, %v459
  %v592 = vmul.f32 %v542, %v460
  %v593 = vmul.f32 %v541, %v461
  %v594 = vmul.f32 %v540, %v462
  %v595 = vmul.f32 %v543, %v463
  %v596 = vmul.f32 %v554, %v464
  %v597 = vmul.f32 %v553, %v465
  %v598 = vmul.f32 %v552, %v466
  %v599 = vmul.f32 %v555, %v467
  %v600 = vmul.f32 %v566, %v468
  %v601 = vmul.f32 %v565, %v469
  %v602 = vmul.f32 %v564, %v470
  %v603 = vmul.f32 %v567, %v471
  %v604 = vld [vmem:[%s8] sm:$0xff]
  %v605 = vld [vmem:[%s9] sm:$0xff]
  %607 = vset.pattern.permute.xlu0 0
  %608 = vperm.xlu0 %607, %v605
  %v609 = vpop.permute.xlu0 %608
  %v612 = vsel %vm242, %v604, 0
  %614 = vmatprep.subr.mxu0 %v569
  %615 = vmatpush1.msra.mxu0 %v568
  %616 = vmatprep.subr.mxu0 %v573
  %617 = vmatpush1.msra.mxu0 %v572
  %618 = vmatprep.subr.mxu0 %v577
  %619 = vmatpush1.msra.mxu0 %v576
  %620 = vmatprep.subr.mxu0 %v581
  %621 = vmatpush1.msra.mxu0 %v580
  %622 = vmatprep.subr.mxu0 %v585
  %623 = vmatpush1.msra.mxu0 %v584
  %624 = vmatprep.subr.mxu0 %v589
  %625 = vmatpush1.msra.mxu0 %v588
  %626 = vmatprep.subr.mxu0 %v593
  %627 = vmatpush1.msra.mxu0 %v592
  %628 = vmatprep.subr.mxu0 %v597
  %629 = vmatpush1.msra.mxu0 %v596
  %630 = vmatprep.subr.mxu0 %v601
  %631 = vmatpush1.msra.mxu0 %v600
  %632 = vmatprep.subr.mxu0 0.0
  %633 = vmatpush1.msra.mxu0 0.0
  %634 = vmatprep.subr.mxu0 0.0
  %635 = vmatpush1.msra.mxu0 0.0
  %636 = vmatprep.subr.mxu0 0.0
  %637 = vmatpush1.msra.mxu0 0.0
  %638 = vmatprep.subr.mxu0 0.0
  %639 = vmatpush1.msra.mxu0 0.0
  %640 = vmatprep.subr.mxu0 0.0
  %641 = vmatpush1.msra.mxu0 0.0
  %642 = vmatprep.subr.mxu0 0.0
  %643 = vmatpush1.msra.mxu0 0.0
  %644 = vmatprep.subr.mxu0 0.0
  %645 = vmatpush1.msra.mxu0 0.0
  %646 = vmatprep.subr.mxu0 0.0
  %647 = vmatpush1.msra.mxu0 0.0
  %648 = vmatprep.subr.mxu0 0.0
  %649 = vmatpush1.msra.mxu0 0.0
  %650 = vmatprep.subr.mxu0 0.0
  %651 = vmatpush1.msra.mxu0 0.0
  %652 = vmatprep.subr.mxu0 0.0
  %653 = vmatpush1.msra.mxu0 0.0
  %654 = vmatprep.subr.mxu0 0.0
  %655 = vmatpush1.msra.mxu0 0.0
  %656 = vmatprep.subr.mxu0 0.0
  %657 = vmatpush1.msra.mxu0 0.0
  %658 = vmatprep.subr.mxu0 0.0
  %659 = vmatpush1.msra.mxu0 0.0
  %660 = vmatprep.subr.mxu0 0.0
  %661 = vmatpush1.msra.mxu0 0.0
  %662 = vmatprep.subr.mxu0 0.0
  %663 = vmatpush1.msra.mxu0 0.0
  %664 = vmatprep.subr.mxu0 0.0
  %665 = vmatpush1.msra.mxu0 0.0
  %666 = vmatprep.subr.mxu0 0.0
  %667 = vmatpush1.msra.mxu0 0.0
  %668 = vmatprep.subr.mxu0 0.0
  %669 = vmatpush1.msra.mxu0 0.0
  %670 = vmatprep.subr.mxu0 0.0
  %671 = vmatpush1.msra.mxu0 0.0
  %672 = vmatprep.subr.mxu0 0.0
  %673 = vmatpush1.msra.mxu0 0.0
  %674 = vmatprep.subr.mxu0 0.0
  %675 = vmatpush1.msra.mxu0 0.0
  %676 = vmatprep.subr.mxu0 0.0
  %677 = vmatpush1.msra.mxu0 0.0
  %678 = vmatprep.mubr.f32.mxu0 0.0
  %679 = vmatmul.mubr.f32.gmra.mrb[0].mxu0 %v612
  %v680 = vpop.f32.mrb[0].mxu0
  %v681 = vadd.f32 %v609, %v680
  %v682 = vpop.f32.mrb[0].mxu0
  %v683 = vadd.f32 %v609, %v682
  %684 = vdwg.mxu0
  %685 = vmatprep.subr.mxu0 %v571
  %686 = vmatpush1.msra.mxu0 %v570
  %687 = vmatprep.subr.mxu0 %v575
  %688 = vmatpush1.msra.mxu0 %v574
  %689 = vmatprep.subr.mxu0 %v579
  %690 = vmatpush1.msra.mxu0 %v578
  %691 = vmatprep.subr.mxu0 %v583
  %692 = vmatpush1.msra.mxu0 %v582
  %693 = vmatprep.subr.mxu0 %v587
  %694 = vmatpush1.msra.mxu0 %v586
  %695 = vmatprep.subr.mxu0 %v591
  %696 = vmatpush1.msra.mxu0 %v590
  %697 = vmatprep.subr.mxu0 %v595
  %698 = vmatpush1.msra.mxu0 %v594
  %699 = vmatprep.subr.mxu0 %v599
  %700 = vmatpush1.msra.mxu0 %v598
  %701 = vmatprep.subr.mxu0 %v603
  %702 = vmatpush1.msra.mxu0 %v602
  %703 = vmatprep.subr.mxu0 0.0
  %704 = vmatpush1.msra.mxu0 0.0
  %705 = vmatprep.subr.mxu0 0.0
  %706 = vmatpush1.msra.mxu0 0.0
  %707 = vmatprep.subr.mxu0 0.0
  %708 = vmatpush1.msra.mxu0 0.0
  %709 = vmatprep.subr.mxu0 0.0
  %710 = vmatpush1.msra.mxu0 0.0
  %711 = vmatprep.subr.mxu0 0.0
  %712 = vmatpush1.msra.mxu0 0.0
  %713 = vmatprep.subr.mxu0 0.0
  %714 = vmatpush1.msra.mxu0 0.0
  %715 = vmatprep.subr.mxu0 0.0
  %716 = vmatpush1.msra.mxu0 0.0
  %717 = vmatprep.subr.mxu0 0.0
  %718 = vmatpush1.msra.mxu0 0.0
  %719 = vmatprep.subr.mxu0 0.0
  %720 = vmatpush1.msra.mxu0 0.0
  %721 = vmatprep.subr.mxu0 0.0
  %722 = vmatpush1.msra.mxu0 0.0
  %723 = vmatprep.subr.mxu0 0.0
  %724 = vmatpush1.msra.mxu0 0.0
  %725 = vmatprep.subr.mxu0 0.0
  %726 = vmatpush1.msra.mxu0 0.0
  %727 = vmatprep.subr.mxu0 0.0
  %728 = vmatpush1.msra.mxu0 0.0
  %729 = vmatprep.subr.mxu0 0.0
  %730 = vmatpush1.msra.mxu0 0.0
  %731 = vmatprep.subr.mxu0 0.0
  %732 = vmatpush1.msra.mxu0 0.0
  %733 = vmatprep.subr.mxu0 0.0
  %734 = vmatpush1.msra.mxu0 0.0
  %735 = vmatprep.subr.mxu0 0.0
  %736 = vmatpush1.msra.mxu0 0.0
  %737 = vmatprep.subr.mxu0 0.0
  %738 = vmatpush1.msra.mxu0 0.0
  %739 = vmatprep.subr.mxu0 0.0
  %740 = vmatpush1.msra.mxu0 0.0
  %741 = vmatprep.subr.mxu0 0.0
  %742 = vmatpush1.msra.mxu0 0.0
  %743 = vmatprep.subr.mxu0 0.0
  %744 = vmatpush1.msra.mxu0 0.0
  %745 = vmatprep.subr.mxu0 0.0
  %746 = vmatpush1.msra.mxu0 0.0
  %747 = vmatprep.subr.mxu0 0.0
  %748 = vmatpush1.msra.mxu0 0.0
  %749 = vmatprep.mubr.f32.mxu0 0.0
  %750 = vmatmul.mubr.f32.gmra.mrb[0].mxu0 %v612
  %v751 = vpop.f32.mrb[0].mxu0
  %v752 = vadd.f32 %v609, %v751
  %v753 = vpop.f32.mrb[0].mxu0
  %v754 = vadd.f32 %v609, %v753
  %755 = vdwg.mxu0
  %v756 = vadd.f32 %v681, %v683
  %v757 = vadd.f32 %v756, %v752
  %v758 = vadd.f32 %v757, %v754
  %759 = vadd.xlane.f32.xlu0 %v758
  %v760 = vpop.xlane.xlu0 %759
  %v761 = vmul.f32 %v760, %v393
  %v762 = vsub.f32 %v681, %v761
  %v763 = vsub.f32 %v683, %v761
  %v764 = vsub.f32 %v752, %v761
  %v765 = vsub.f32 %v754, %v761
  %v766 = vmul.f32 %v762, %v762
  %v767 = vmul.f32 %v763, %v763
  %v768 = vmul.f32 %v764, %v764
  %v769 = vmul.f32 %v765, %v765
  %v770 = vadd.f32 %v766, %v767
  %v771 = vadd.f32 %v770, %v768
  %v772 = vadd.f32 %v771, %v769
  %773 = vadd.xlane.f32.xlu0 %v772
  %v774 = vpop.xlane.xlu0 %773
  %v775 = vmul.f32 %v774, %v393
  %v776 = vld [vmem:[%s10] sm:$0xff]
  %v777 = vadd.f32 %v775, 1e-05
  %v778 = vrsqrt.pop %v777
  %v779 = vmul.f32 %v776, %v778
  %781 = vset.pattern.permute.xlu0 0
  %782 = vperm.xlu0 %781, %v779
  %v783 = vpop.permute.xlu0 %782
  %v785 = vmul.f32 %v762, %v783
  %v786 = vmul.f32 %v763, %v783
  %v787 = vmul.f32 %v764, %v783
  %v788 = vmul.f32 %v765, %v783
  %v789 = vld [vmem:[%s11] sm:$0xff]
  %791 = vset.pattern.permute.xlu0 0
  %792 = vperm.xlu0 %791, %v789
  %v793 = vpop.permute.xlu0 %792
  %v795 = vadd.f32 %v785, %v793
  %v796 = vadd.f32 %v786, %v793
  %v797 = vadd.f32 %v787, %v793
  %v798 = vadd.f32 %v788, %v793
  %v799 = vmax.f32 %v795, 0.0
  %v800 = vmax.f32 %v796, 0.0
  %v801 = vmax.f32 %v797, 0.0
  %v802 = vmax.f32 %v798, 0.0
  %v803 = vld [vmem:[%s3] sm:$0xff]
  %v804 = vld [vmem:[%s3 + $0x8] sm:$0xff]
  %v805 = vld [vmem:[%s3 + $0x10] sm:$0xff]
  %v806 = vld [vmem:[%s3 + $0x18] sm:$0xff]
  %v807 = vld [vmem:[%s3 + $0x20] sm:$0xff]
  %v808 = vld [vmem:[%s3 + $0x28] sm:$0xff]
  %v809 = vld [vmem:[%s3 + $0x30] sm:$0xff]
  %v810 = vld [vmem:[%s3 + $0x38] sm:$0xff]
  %v811 = vld [vmem:[%s3 + $0x40] sm:$0xff]
  %v812 = vld [vmem:[%s3 + $0x48] sm:$0xff]
  %v813 = vld [vmem:[%s3 + $0x50] sm:$0xff]
  %v814 = vld [vmem:[%s3 + $0x58] sm:$0xff]
  %v815 = vld [vmem:[%s3 + $0x60] sm:$0xff]
  %v816 = vld [vmem:[%s3 + $0x68] sm:$0xff]
  %v817 = vld [vmem:[%s3 + $0x70] sm:$0xff]
  %v818 = vld [vmem:[%s3 + $0x78] sm:$0xff]
  %v819 = vld [vmem:[%s3 + $0x80] sm:$0xff]
  %v820 = vld [vmem:[%s3 + $0x88] sm:$0xff]
  %v821 = vld [vmem:[%s3 + $0x90] sm:$0xff]
  %v822 = vld [vmem:[%s3 + $0x98] sm:$0xff]
  %v823 = vld [vmem:[%s3 + $0xa0] sm:$0xff]
  %v824 = vld [vmem:[%s3 + $0xa8] sm:$0xff]
  %v825 = vld [vmem:[%s3 + $0xb0] sm:$0xff]
  %v826 = vld [vmem:[%s3 + $0xb8] sm:$0xff]
  %v827 = vld [vmem:[%s3 + $0xc0] sm:$0xff]
  %v828 = vld [vmem:[%s3 + $0xc8] sm:$0xff]
  %v829 = vld [vmem:[%s3 + $0xd0] sm:$0xff]
  %v830 = vld [vmem:[%s3 + $0xd8] sm:$0xff]
  %v831 = vld [vmem:[%s3 + $0xe0] sm:$0xff]
  %v832 = vld [vmem:[%s3 + $0xe8] sm:$0xff]
  %v833 = vld [vmem:[%s3 + $0xf0] sm:$0xff]
  %v834 = vld [vmem:[%s3 + $0xf8] sm:$0xff]
  %v835 = vld [vmem:[%s3 + $0x100] sm:$0xff]
  %v836 = vld [vmem:[%s3 + $0x108] sm:$0xff]
  %v837 = vld [vmem:[%s3 + $0x110] sm:$0xff]
  %v838 = vld [vmem:[%s3 + $0x118] sm:$0xff]
  %839 = vrot.lane.b32.xlu0 %v799, 17
  %v840 = vpop.permute.xlu0 %839
  %841 = vrot.lane.b32.xlu0 %v800, 17
  %v842 = vpop.permute.xlu0 %841
  %843 = vrot.lane.b32.xlu0 %v801, 17
  %v844 = vpop.permute.xlu0 %843
  %845 = vrot.lane.b32.xlu0 %v802, 17
  %v846 = vpop.permute.xlu0 %845
  %v847 = vsel %vm103, %v844, %v846
  %v848 = vsel %vm103, %v842, %v844
  %v849 = vsel %vm103, %v840, %v842
  %v850 = vsel %vm103, %v846, %v840
  %851 = vrot.lane.b32.xlu0 %v799, 16
  %v852 = vpop.permute.xlu0 %851
  %853 = vrot.lane.b32.xlu0 %v800, 16
  %v854 = vpop.permute.xlu0 %853
  %855 = vrot.lane.b32.xlu0 %v801, 16
  %v856 = vpop.permute.xlu0 %855
  %857 = vrot.lane.b32.xlu0 %v802, 16
  %v858 = vpop.permute.xlu0 %857
  %v859 = vsel %vm116, %v856, %v858
  %v860 = vsel %vm116, %v854, %v856
  %v861 = vsel %vm116, %v852, %v854
  %v862 = vsel %vm116, %v858, %v852
  %863 = vrot.lane.b32.xlu0 %v799, 15
  %v864 = vpop.permute.xlu0 %863
  %865 = vrot.lane.b32.xlu0 %v800, 15
  %v866 = vpop.permute.xlu0 %865
  %867 = vrot.lane.b32.xlu0 %v801, 15
  %v868 = vpop.permute.xlu0 %867
  %869 = vrot.lane.b32.xlu0 %v802, 15
  %v870 = vpop.permute.xlu0 %869
  %v871 = vsel %vm129, %v868, %v870
  %v872 = vsel %vm129, %v866, %v868
  %v873 = vsel %vm129, %v864, %v866
  %v874 = vsel %vm129, %v870, %v864
  %875 = vrot.lane.b32.xlu0 %v799, 1
  %v876 = vpop.permute.xlu0 %875
  %877 = vrot.lane.b32.xlu0 %v800, 1
  %v878 = vpop.permute.xlu0 %877
  %879 = vrot.lane.b32.xlu0 %v801, 1
  %v880 = vpop.permute.xlu0 %879
  %881 = vrot.lane.b32.xlu0 %v802, 1
  %v882 = vpop.permute.xlu0 %881
  %v883 = vsel %vm142, %v880, %v882
  %v884 = vsel %vm142, %v878, %v880
  %v885 = vsel %vm142, %v876, %v878
  %v886 = vsel %vm142, %v882, %v876
  %887 = vrot.lane.b32.xlu0 %v799, 127
  %v888 = vpop.permute.xlu0 %887
  %889 = vrot.lane.b32.xlu0 %v800, 127
  %v890 = vpop.permute.xlu0 %889
  %891 = vrot.lane.b32.xlu0 %v801, 127
  %v892 = vpop.permute.xlu0 %891
  %893 = vrot.lane.b32.xlu0 %v802, 127
  %v894 = vpop.permute.xlu0 %893
  %v895 = vsel %vm155, %v892, %v894
  %v896 = vsel %vm155, %v890, %v892
  %v897 = vsel %vm155, %v888, %v890
  %v898 = vsel %vm155, %v894, %v888
  %899 = vrot.lane.b32.xlu0 %v799, 113
  %v900 = vpop.permute.xlu0 %899
  %901 = vrot.lane.b32.xlu0 %v800, 113
  %v902 = vpop.permute.xlu0 %901
  %903 = vrot.lane.b32.xlu0 %v801, 113
  %v904 = vpop.permute.xlu0 %903
  %905 = vrot.lane.b32.xlu0 %v802, 113
  %v906 = vpop.permute.xlu0 %905
  %v907 = vsel %vm168, %v904, %v906
  %v908 = vsel %vm168, %v902, %v904
  %v909 = vsel %vm168, %v900, %v902
  %v910 = vsel %vm168, %v906, %v900
  %911 = vrot.lane.b32.xlu0 %v799, 112
  %v912 = vpop.permute.xlu0 %911
  %913 = vrot.lane.b32.xlu0 %v800, 112
  %v914 = vpop.permute.xlu0 %913
  %915 = vrot.lane.b32.xlu0 %v801, 112
  %v916 = vpop.permute.xlu0 %915
  %917 = vrot.lane.b32.xlu0 %v802, 112
  %v918 = vpop.permute.xlu0 %917
  %v919 = vsel %vm181, %v916, %v918
  %v920 = vsel %vm181, %v914, %v916
  %v921 = vsel %vm181, %v912, %v914
  %v922 = vsel %vm181, %v918, %v912
  %923 = vrot.lane.b32.xlu0 %v799, 111
  %v924 = vpop.permute.xlu0 %923
  %925 = vrot.lane.b32.xlu0 %v800, 111
  %v926 = vpop.permute.xlu0 %925
  %927 = vrot.lane.b32.xlu0 %v801, 111
  %v928 = vpop.permute.xlu0 %927
  %929 = vrot.lane.b32.xlu0 %v802, 111
  %v930 = vpop.permute.xlu0 %929
  %v931 = vsel %vm194, %v928, %v930
  %v932 = vsel %vm194, %v926, %v928
  %v933 = vsel %vm194, %v924, %v926
  %v934 = vsel %vm194, %v930, %v924
  %v935 = vmul.f32 %v850, %v803
  %v936 = vmul.f32 %v849, %v804
  %v937 = vmul.f32 %v848, %v805
  %v938 = vmul.f32 %v847, %v806
  %v939 = vmul.f32 %v862, %v807
  %v940 = vmul.f32 %v861, %v808
  %v941 = vmul.f32 %v860, %v809
  %v942 = vmul.f32 %v859, %v810
  %v943 = vmul.f32 %v874, %v811
  %v944 = vmul.f32 %v873, %v812
  %v945 = vmul.f32 %v872, %v813
  %v946 = vmul.f32 %v871, %v814
  %v947 = vmul.f32 %v886, %v815
  %v948 = vmul.f32 %v885, %v816
  %v949 = vmul.f32 %v884, %v817
  %v950 = vmul.f32 %v883, %v818
  %v951 = vmul.f32 %v799, %v819
  %v952 = vmul.f32 %v800, %v820
  %v953 = vmul.f32 %v801, %v821
  %v954 = vmul.f32 %v802, %v822
  %v955 = vmul.f32 %v897, %v823
  %v956 = vmul.f32 %v896, %v824
  %v957 = vmul.f32 %v895, %v825
  %v958 = vmul.f32 %v898, %v826
  %v959 = vmul.f32 %v909, %v827
  %v960 = vmul.f32 %v908, %v828
  %v961 = vmul.f32 %v907, %v829
  %v962 = vmul.f32 %v910, %v830
  %v963 = vmul.f32 %v921, %v831
  %v964 = vmul.f32 %v920, %v832
  %v965 = vmul.f32 %v919, %v833
  %v966 = vmul.f32 %v922, %v834
  %v967 = vmul.f32 %v933, %v835
  %v968 = vmul.f32 %v932, %v836
  %v969 = vmul.f32 %v931, %v837
  %v970 = vmul.f32 %v934, %v838
  %v971 = vld [vmem:[%s12] sm:$0xff]
  %v972 = vld [vmem:[%s13] sm:$0xff]
  %974 = vset.pattern.permute.xlu0 0
  %975 = vperm.xlu0 %974, %v972
  %v976 = vpop.permute.xlu0 %975
  %v979 = vsel %vm242, %v971, 0
  %981 = vmatprep.subr.mxu0 %v936
  %982 = vmatpush1.msra.mxu0 %v935
  %983 = vmatprep.subr.mxu0 %v940
  %984 = vmatpush1.msra.mxu0 %v939
  %985 = vmatprep.subr.mxu0 %v944
  %986 = vmatpush1.msra.mxu0 %v943
  %987 = vmatprep.subr.mxu0 %v948
  %988 = vmatpush1.msra.mxu0 %v947
  %989 = vmatprep.subr.mxu0 %v952
  %990 = vmatpush1.msra.mxu0 %v951
  %991 = vmatprep.subr.mxu0 %v956
  %992 = vmatpush1.msra.mxu0 %v955
  %993 = vmatprep.subr.mxu0 %v960
  %994 = vmatpush1.msra.mxu0 %v959
  %995 = vmatprep.subr.mxu0 %v964
  %996 = vmatpush1.msra.mxu0 %v963
  %997 = vmatprep.subr.mxu0 %v968
  %998 = vmatpush1.msra.mxu0 %v967
  %999 = vmatprep.subr.mxu0 0.0
  %1000 = vmatpush1.msra.mxu0 0.0
  %1001 = vmatprep.subr.mxu0 0.0
  %1002 = vmatpush1.msra.mxu0 0.0
  %1003 = vmatprep.subr.mxu0 0.0
  %1004 = vmatpush1.msra.mxu0 0.0
  %1005 = vmatprep.subr.mxu0 0.0
  %1006 = vmatpush1.msra.mxu0 0.0
  %1007 = vmatprep.subr.mxu0 0.0
  %1008 = vmatpush1.msra.mxu0 0.0
  %1009 = vmatprep.subr.mxu0 0.0
  %1010 = vmatpush1.msra.mxu0 0.0
  %1011 = vmatprep.subr.mxu0 0.0
  %1012 = vmatpush1.msra.mxu0 0.0
  %1013 = vmatprep.subr.mxu0 0.0
  %1014 = vmatpush1.msra.mxu0 0.0
  %1015 = vmatprep.subr.mxu0 0.0
  %1016 = vmatpush1.msra.mxu0 0.0
  %1017 = vmatprep.subr.mxu0 0.0
  %1018 = vmatpush1.msra.mxu0 0.0
  %1019 = vmatprep.subr.mxu0 0.0
  %1020 = vmatpush1.msra.mxu0 0.0
  %1021 = vmatprep.subr.mxu0 0.0
  %1022 = vmatpush1.msra.mxu0 0.0
  %1023 = vmatprep.subr.mxu0 0.0
  %1024 = vmatpush1.msra.mxu0 0.0
  %1025 = vmatprep.subr.mxu0 0.0
  %1026 = vmatpush1.msra.mxu0 0.0
  %1027 = vmatprep.subr.mxu0 0.0
  %1028 = vmatpush1.msra.mxu0 0.0
  %1029 = vmatprep.subr.mxu0 0.0
  %1030 = vmatpush1.msra.mxu0 0.0
  %1031 = vmatprep.subr.mxu0 0.0
  %1032 = vmatpush1.msra.mxu0 0.0
  %1033 = vmatprep.subr.mxu0 0.0
  %1034 = vmatpush1.msra.mxu0 0.0
  %1035 = vmatprep.subr.mxu0 0.0
  %1036 = vmatpush1.msra.mxu0 0.0
  %1037 = vmatprep.subr.mxu0 0.0
  %1038 = vmatpush1.msra.mxu0 0.0
  %1039 = vmatprep.subr.mxu0 0.0
  %1040 = vmatpush1.msra.mxu0 0.0
  %1041 = vmatprep.subr.mxu0 0.0
  %1042 = vmatpush1.msra.mxu0 0.0
  %1043 = vmatprep.subr.mxu0 0.0
  %1044 = vmatpush1.msra.mxu0 0.0
  %1045 = vmatprep.mubr.f32.mxu0 0.0
  %1046 = vmatmul.mubr.f32.gmra.mrb[0].mxu0 %v979
  %v1047 = vpop.f32.mrb[0].mxu0
  %v1048 = vadd.f32 %v976, %v1047
  %v1049 = vpop.f32.mrb[0].mxu0
  %v1050 = vadd.f32 %v976, %v1049
  %1051 = vdwg.mxu0
  %1052 = vmatprep.subr.mxu0 %v938
  %1053 = vmatpush1.msra.mxu0 %v937
  %1054 = vmatprep.subr.mxu0 %v942
  %1055 = vmatpush1.msra.mxu0 %v941
  %1056 = vmatprep.subr.mxu0 %v946
  %1057 = vmatpush1.msra.mxu0 %v945
  %1058 = vmatprep.subr.mxu0 %v950
  %1059 = vmatpush1.msra.mxu0 %v949
  %1060 = vmatprep.subr.mxu0 %v954
  %1061 = vmatpush1.msra.mxu0 %v953
  %1062 = vmatprep.subr.mxu0 %v958
  %1063 = vmatpush1.msra.mxu0 %v957
  %1064 = vmatprep.subr.mxu0 %v962
  %1065 = vmatpush1.msra.mxu0 %v961
  %1066 = vmatprep.subr.mxu0 %v966
  %1067 = vmatpush1.msra.mxu0 %v965
  %1068 = vmatprep.subr.mxu0 %v970
  %1069 = vmatpush1.msra.mxu0 %v969
  %1070 = vmatprep.subr.mxu0 0.0
  %1071 = vmatpush1.msra.mxu0 0.0
  %1072 = vmatprep.subr.mxu0 0.0
  %1073 = vmatpush1.msra.mxu0 0.0
  %1074 = vmatprep.subr.mxu0 0.0
  %1075 = vmatpush1.msra.mxu0 0.0
  %1076 = vmatprep.subr.mxu0 0.0
  %1077 = vmatpush1.msra.mxu0 0.0
  %1078 = vmatprep.subr.mxu0 0.0
  %1079 = vmatpush1.msra.mxu0 0.0
  %1080 = vmatprep.subr.mxu0 0.0
  %1081 = vmatpush1.msra.mxu0 0.0
  %1082 = vmatprep.subr.mxu0 0.0
  %1083 = vmatpush1.msra.mxu0 0.0
  %1084 = vmatprep.subr.mxu0 0.0
  %1085 = vmatpush1.msra.mxu0 0.0
  %1086 = vmatprep.subr.mxu0 0.0
  %1087 = vmatpush1.msra.mxu0 0.0
  %1088 = vmatprep.subr.mxu0 0.0
  %1089 = vmatpush1.msra.mxu0 0.0
  %1090 = vmatprep.subr.mxu0 0.0
  %1091 = vmatpush1.msra.mxu0 0.0
  %1092 = vmatprep.subr.mxu0 0.0
  %1093 = vmatpush1.msra.mxu0 0.0
  %1094 = vmatprep.subr.mxu0 0.0
  %1095 = vmatpush1.msra.mxu0 0.0
  %1096 = vmatprep.subr.mxu0 0.0
  %1097 = vmatpush1.msra.mxu0 0.0
  %1098 = vmatprep.subr.mxu0 0.0
  %1099 = vmatpush1.msra.mxu0 0.0
  %1100 = vmatprep.subr.mxu0 0.0
  %1101 = vmatpush1.msra.mxu0 0.0
  %1102 = vmatprep.subr.mxu0 0.0
  %1103 = vmatpush1.msra.mxu0 0.0
  %1104 = vmatprep.subr.mxu0 0.0
  %1105 = vmatpush1.msra.mxu0 0.0
  %1106 = vmatprep.subr.mxu0 0.0
  %1107 = vmatpush1.msra.mxu0 0.0
  %1108 = vmatprep.subr.mxu0 0.0
  %1109 = vmatpush1.msra.mxu0 0.0
  %1110 = vmatprep.subr.mxu0 0.0
  %1111 = vmatpush1.msra.mxu0 0.0
  %1112 = vmatprep.subr.mxu0 0.0
  %1113 = vmatpush1.msra.mxu0 0.0
  %1114 = vmatprep.subr.mxu0 0.0
  %1115 = vmatpush1.msra.mxu0 0.0
  %1116 = vmatprep.mubr.f32.mxu0 0.0
  %1117 = vmatmul.mubr.f32.gmra.mrb[0].mxu0 %v979
  %v1118 = vpop.f32.mrb[0].mxu0
  %v1119 = vadd.f32 %v976, %v1118
  %v1120 = vpop.f32.mrb[0].mxu0
  %v1121 = vadd.f32 %v976, %v1120
  %1122 = vdwg.mxu0
  %v1123 = vadd.f32 %v1048, %v1050
  %v1124 = vadd.f32 %v1123, %v1119
  %v1125 = vadd.f32 %v1124, %v1121
  %1126 = vadd.xlane.f32.xlu0 %v1125
  %v1127 = vpop.xlane.xlu0 %1126
  %v1128 = vmul.f32 %v1127, %v393
  %v1129 = vsub.f32 %v1048, %v1128
  %v1130 = vsub.f32 %v1050, %v1128
  %v1131 = vsub.f32 %v1119, %v1128
  %v1132 = vsub.f32 %v1121, %v1128
  %v1133 = vmul.f32 %v1129, %v1129
  %v1134 = vmul.f32 %v1130, %v1130
  %v1135 = vmul.f32 %v1131, %v1131
  %v1136 = vmul.f32 %v1132, %v1132
  %v1137 = vadd.f32 %v1133, %v1134
  %v1138 = vadd.f32 %v1137, %v1135
  %v1139 = vadd.f32 %v1138, %v1136
  %1140 = vadd.xlane.f32.xlu0 %v1139
  %v1141 = vpop.xlane.xlu0 %1140
  %v1142 = vmul.f32 %v1141, %v393
  %v1143 = vld [vmem:[%s14] sm:$0xff]
  %v1144 = vadd.f32 %v1142, 1e-05
  %v1145 = vrsqrt.pop %v1144
  %v1146 = vmul.f32 %v1143, %v1145
  %1148 = vset.pattern.permute.xlu0 0
  %1149 = vperm.xlu0 %1148, %v1146
  %v1150 = vpop.permute.xlu0 %1149
  %v1152 = vmul.f32 %v1129, %v1150
  %v1153 = vmul.f32 %v1130, %v1150
  %v1154 = vmul.f32 %v1131, %v1150
  %v1155 = vmul.f32 %v1132, %v1150
  %v1156 = vld [vmem:[%s15] sm:$0xff]
  %1158 = vset.pattern.permute.xlu0 0
  %1159 = vperm.xlu0 %1158, %v1156
  %v1160 = vpop.permute.xlu0 %1159
  %v1162 = vadd.f32 %v1152, %v1160
  %v1163 = vadd.f32 %v1153, %v1160
  %v1164 = vadd.f32 %v1154, %v1160
  %v1165 = vadd.f32 %v1155, %v1160
  %v1166 = vmax.f32 %v1162, 0.0
  %v1167 = vmax.f32 %v1163, 0.0
  %v1168 = vmax.f32 %v1164, 0.0
  %v1169 = vmax.f32 %v1165, 0.0
  %1170 = vst [vmem:[%s16] sm:$0xff] %v1166
  %1171 = vst [vmem:[%s16 + $0x8] sm:$0xff] %v1167
  %1172 = vst [vmem:[%s16 + $0x10] sm:$0xff] %v1168
  %1173 = vst [vmem:[%s16 + $0x18] sm:$0xff] %v1169
  // Predicated region
  $region66: #{cnn_layer_3_forward.1} parent=0 // pred_check
    _
  $region67: #{cnn_layer_3_forward.1} parent=0 // pred_check_branch
    %1175 = sbr.rel (0) target = $region69
  $region68: #{cnn_layer_3_forward.1} parent=0 // pred_region
    _
  $region69: #{cnn_layer_3_forward.1} parent=0 // pred_fallthru
    _
  // Predicated region
  $region70: #{cnn_layer_3_forward.1} parent=0 // pred_check
    _
  $region71: #{cnn_layer_3_forward.1} parent=0 // pred_check_branch
    %1177 = sbr.rel (0) target = $region73
  $region72: #{cnn_layer_3_forward.1} parent=0 // pred_region
    _
  $region73: #{cnn_layer_3_forward.1} parent=0 // pred_fallthru
    _

</llo_original>
